<compile_context>
chip_gen: v7x
topology: tpu7x:2x2x1
jax: 0.10.0
libtpu: 0.0.40
codegen_flags: <defaults>
</compile_context>

<pallas_src>
import functools

import numpy as np
import jax
import jax.numpy as jnp
from jax.experimental import pallas as pl
from jax.experimental.pallas import tpu as pltpu

BN_EPS = 1e-5


def _round_up(x, m):
    return ((x + m - 1) // m) * m


def _vmem_limit(working_set_bytes):
    # Scoped-VMEM cap derived from the actual per-step working set (2x headroom
    # for compiler scratch / lane padding of small D), floored at the 32 MiB
    # default and kept under physical VMEM on all generations (v7x: 64 MiB).
    return int(min(max(2 * working_set_bytes, 32 << 20), 96 << 20))


def _stage1_kernel(lens_ref, xc_ref, xh_ref, w1a_ref, b1a_ref, w1b_ref, b1b_ref,
                   wdw_ref, h_ref, sum_ref, ssq_ref, zbuf_ref, *, ksize, seq_len):
    """pw1 + GLU (one matmul per half over center+halo window) + pad-mask
    + depthwise conv + shifted BN-stat accumulation.

    Writes the bias-free depthwise output; the depthwise bias is absorbed
    exactly by the batch-stat BN mean subtraction downstream.
    """
    pad = (ksize - 1) // 2
    _, TT, D = h_ref.shape
    c, t = pl.program_id(1), pl.program_id(2)
    nti = pl.num_programs(2)
    start = (c * nti + t) * TT
    len_b = lens_ref[pl.program_id(0)]

    # masks rebuilt in-kernel from the prefetched sequence length (no mask DMAs)
    rows = jax.lax.broadcasted_iota(jnp.int32, (TT, 1), 0) + start
    keep_c = (rows < len_b).astype(jnp.float32)        # pad_mask (prefix/length)
    valid = (rows < seq_len).astype(jnp.float32)       # real (non-tile-pad) rows

    x_c = xc_ref[0]                                    # (TT, D)  matmul dtype
    if pad > 0:
        x_h = xh_ref[0, 0]                             # (2*pad, D)
        hrows = jax.lax.broadcasted_iota(jnp.int32, (2 * pad, 1), 0)
        g_h = jnp.where(hrows < pad, start - pad + hrows, start + TT + hrows - pad)
        keep_h = ((g_h >= 0) & (g_h < len_b)).astype(jnp.float32)
        x_win = jnp.concatenate([x_h[:pad], x_c, x_h[pad:]], axis=0)
        keep_win = jnp.concatenate([keep_h[:pad], keep_c, keep_h[pad:]], axis=0)
    else:
        x_win, keep_win = x_c, keep_c

    # pointwise_conv1 + GLU: one MXU matmul per half over the whole window
    value = jnp.dot(x_win, w1a_ref[...], preferred_element_type=jnp.float32) + b1a_ref[...]
    gate = jnp.dot(x_win, w1b_ref[...], preferred_element_type=jnp.float32) + b1b_ref[...]
    zbuf_ref[...] = value * jax.nn.sigmoid(gate) * keep_win    # (TT+2*pad, D) f32

    # depthwise conv along time: K offset loads from VMEM scratch (vld slots)
    wdw = wdw_ref[...]                                 # (K, D) f32, read once
    taps = jnp.zeros((TT, D), jnp.float32)
    for k in range(ksize):
        taps = taps + zbuf_ref[pl.ds(k, TT), :] * wdw[k:k + 1, :]

    # per-channel BN statistics on the bias-centred value (shifted accumulation),
    # excluding artificially padded time rows
    tv = taps * valid

    @pl.when(t == 0)
    def _():
        sum_ref[...] = jnp.zeros_like(sum_ref)
        ssq_ref[...] = jnp.zeros_like(ssq_ref)

    sum_ref[...] += jnp.sum(tv, axis=0, keepdims=True)[None]          # (1,1,D)
    ssq_ref[...] += jnp.sum(tv * taps, axis=0, keepdims=True)[None]

    h_ref[...] = taps[None].astype(h_ref.dtype)


def _stage2_kernel(h_ref, scale_ref, shift_ref, w2_ref, b2_ref, o_ref, *,
                   matmul_dtype):
    """BN affine + SiLU + pointwise_conv2 per tile (fully parallel)."""
    h = h_ref[0].astype(jnp.float32)                   # (TT, D) bias-free dw out
    hn = h * scale_ref[...] + shift_ref[...]           # BatchNorm (batch stats)
    s = hn * jax.nn.sigmoid(hn)                        # SiLU
    out = jnp.dot(s.astype(matmul_dtype), w2_ref[...],
                  preferred_element_type=jnp.float32) + b2_ref[...]
    o_ref[...] = out[None].astype(o_ref.dtype)


def conformer_convolution(x, params, pad_mask=None, *, tile_t=512, time_splits=1,
                          matmul_dtype=jnp.bfloat16, h_dtype=jnp.bfloat16):
    """x: (B, T, D); pad_mask: optional (B, T) bool (True = padded frame).

    time_splits > 1 emits per-split partial BN statistics so the time axis can
    be sharded across TensorCores (v7x) even at B=1.
    """
    B, T, D = x.shape
    K = params["wdw"].shape[0]
    assert (K - 1) % 2 == 0
    pad = (K - 1) // 2
    NC = max(int(time_splits), 1)

    # time tiling: TT multiple of 16 (bf16 sublane pack), Tp multiple of TT*NC
    TT = _round_up(min(tile_t, _round_up(T, 16)), 16)
    Tp = _round_up(T, TT * NC)
    nT = Tp // TT
    nTi = nT // NC

    # activations pre-cast to the matmul dtype (halves stage-1 HBM reads)
    xp = jnp.pad(x, ((0, 0), (0, Tp - T), (0, 0))).astype(matmul_dtype)

    # depthwise halo rows gathered once in XLA: (B, nT, 2*PH, D)
    PH = max(pad, 1)
    starts = np.arange(nT) * TT
    off = np.arange(PH)
    idx = np.concatenate([starts[:, None] + off[None, :] - pad,
                          starts[:, None] + TT + off[None, :]], axis=1)
    idx = np.clip(idx.reshape(-1), 0, Tp - 1)   # out-of-range rows masked in-kernel
    xhalo = jnp.take(xp, jnp.asarray(idx, jnp.int32), axis=1).reshape(B, nT, 2 * PH, D)

    if pad_mask is None:
        lengths = jnp.full((B,), T, jnp.int32)
    else:
        # TODO(synk): in-kernel masking assumes a prefix-style pad_mask (length
        #             mask, the standard case for this encoder); arbitrary
        #             non-prefix masks would need the dense mask-tensor path.
        lengths = jnp.sum(jnp.logical_not(pad_mask), axis=1).astype(jnp.int32)

    # weights: pw1 split into GLU value/gate halves; matmul weights in bf16
    w1a = params["w1"][:, :D].astype(matmul_dtype)
    w1b = params["w1"][:, D:].astype(matmul_dtype)
    b1a = params["b1"][:, :D].astype(jnp.float32)
    b1b = params["b1"][:, D:].astype(jnp.float32)
    wdw = params["wdw"].astype(jnp.float32)
    w2 = params["w2"].astype(matmul_dtype)
    b2 = params["b2"].astype(jnp.float32)
    # NOTE: params["bdw"] (depthwise bias) is absorbed exactly by the batch-stat
    # BN mean subtraction and therefore never enters the computation.

    mmb = np.dtype(matmul_dtype).itemsize
    hb = np.dtype(h_dtype).itemsize
    ob = np.dtype(x.dtype).itemsize

    widx = lambda b, c, t, lens: (0, 0)
    ctr = lambda b, c, t, lens: (b, c * nTi + t, 0)
    halo_map = lambda b, c, t, lens: (b, c * nTi + t, 0, 0)
    stat = lambda b, c, t, lens: (b * NC + c, 0, 0)

    # ---- stage 1: pw1 + GLU + mask + depthwise + BN partial stats -------------
    est1 = (2 * TT * D * mmb + 2 * 2 * PH * D * mmb            # x tile + halo
            + 2 * (2 * D * D * mmb + 4 * D * 4 + K * D * 4)    # resident weights
            + 2 * (TT * D * hb + 2 * D * 4)                    # outputs
            + (TT + 2 * pad) * D * 4)                          # z-window scratch
    h, sums, ssqs = pl.pallas_call(
        functools.partial(_stage1_kernel, ksize=K, seq_len=T),
        grid_spec=pltpu.PrefetchScalarGridSpec(
            num_scalar_prefetch=1,
            grid=(B, NC, nTi),
            in_specs=[
                pl.BlockSpec((1, TT, D), ctr),                          # x center
                pl.BlockSpec((1, 1, 2 * PH, D), halo_map),              # x halo
                pl.BlockSpec((D, D), widx), pl.BlockSpec((1, D), widx),  # w1a, b1a
                pl.BlockSpec((D, D), widx), pl.BlockSpec((1, D), widx),  # w1b, b1b
                pl.BlockSpec((K, D), widx),                              # wdw
            ],
            out_specs=[
                pl.BlockSpec((1, TT, D), ctr),        # bias-free depthwise output
                pl.BlockSpec((1, 1, D), stat),        # partial sum
                pl.BlockSpec((1, 1, D), stat),        # partial sum-of-squares
            ],
            scratch_shapes=[pltpu.VMEM((TT + 2 * pad, D), jnp.float32)],
        ),
        out_shape=[
            jax.ShapeDtypeStruct((B, Tp, D), h_dtype),
            jax.ShapeDtypeStruct((B * NC, 1, D), jnp.float32),
            jax.ShapeDtypeStruct((B * NC, 1, D), jnp.float32),
        ],
        compiler_params=pltpu.CompilerParams(
            dimension_semantics=("parallel", "parallel", "arbitrary"),
            vmem_limit_bytes=_vmem_limit(est1)),
    )(lengths, xp, xhalo, w1a, b1a, w1b, b1b, wdw)

    # ---- finalize BN batch statistics (tiny, done in XLA) ---------------------
    n = jnp.float32(B * T)
    s_mean = jnp.sum(sums, axis=0) / n                 # E[h - bdw]      (1, D)
    ex2 = jnp.sum(ssqs, axis=0) / n
    var = jnp.maximum(ex2 - s_mean * s_mean, 0.0)      # Var[h]
    inv = jax.lax.rsqrt(var + BN_EPS)
    scale = params["gamma"].astype(jnp.float32) * inv
    shift = params["beta"].astype(jnp.float32) - s_mean * scale

    # ---- stage 2: BN affine + SiLU + pw2 --------------------------------------
    widx2 = lambda b, t: (0, 0)
    est2 = 2 * TT * D * hb + 2 * (D * D * mmb + 3 * D * 4) + 2 * TT * D * ob
    out = pl.pallas_call(
        functools.partial(_stage2_kernel, matmul_dtype=matmul_dtype),
        grid=(B, nT),
        in_specs=[
            pl.BlockSpec((1, TT, D), lambda b, t: (b, t, 0)),
            pl.BlockSpec((1, D), widx2), pl.BlockSpec((1, D), widx2),  # scale, shift
            pl.BlockSpec((D, D), widx2), pl.BlockSpec((1, D), widx2),  # w2, b2
        ],
        out_specs=pl.BlockSpec((1, TT, D), lambda b, t: (b, t, 0)),
        out_shape=jax.ShapeDtypeStruct((B, Tp, D), x.dtype),
        compiler_params=pltpu.CompilerParams(
            dimension_semantics=("parallel", "parallel"),
            vmem_limit_bytes=_vmem_limit(est2)),
    )(h, scale, shift, w2, b2)

    # slice is a no-op when Tp == T; downstream code tolerating Tp-padded time
    # can consume `out` directly.
    return out[:, :T, :]


def _reference(x, params, pad_mask=None, matmul_dtype=jnp.bfloat16):
    """Pure-JAX mirror of the PyTorch forward; matmuls use the same bf16 cast."""
    B, T, D = x.shape
    K = params["wdw"].shape[0]
    pad = (K - 1) // 2
    y = jnp.einsum("btd,dc->btc", x.astype(matmul_dtype),
                   params["w1"].astype(matmul_dtype),
                   preferred_element_type=jnp.float32) + params["b1"]
    z = y[..., :D] * jax.nn.sigmoid(y[..., D:])
    if pad_mask is not None:
        z = jnp.where(pad_mask[:, :, None], 0.0, z)
    zp = jnp.pad(z, ((0, 0), (pad, pad), (0, 0)))
    h = sum(zp[:, k:k + T, :] * params["wdw"][k] for k in range(K))
    h = h + params["bdw"][0]
    mean = jnp.mean(h, axis=(0, 1), keepdims=True)
    var = jnp.mean((h - mean) ** 2, axis=(0, 1), keepdims=True)
    hn = (h - mean) * jax.lax.rsqrt(var + BN_EPS)
    hn = hn * params["gamma"][0] + params["beta"][0]
    s = hn * jax.nn.sigmoid(hn)
    return jnp.einsum("btd,dc->btc", s.astype(matmul_dtype),
                      params["w2"].astype(matmul_dtype),
                      preferred_element_type=jnp.float32) + params["b2"]


def _init_params(key, d_model, kernel_size):
    ks = jax.random.split(key, 8)
    sc = 0.1
    return {
        # pointwise_conv1: Conv1d(D, 2D, 1) -> stored as (D, 2D)
        "w1": sc * jax.random.normal(ks[0], (d_model, 2 * d_model), jnp.float32),
        "b1": sc * jax.random.normal(ks[1], (1, 2 * d_model), jnp.float32),
        # depthwise_conv: Conv1d(D, D, K, groups=D) -> stored as (K, D)
        "wdw": sc * jax.random.normal(ks[2], (kernel_size, d_model), jnp.float32),
        "bdw": sc * jax.random.normal(ks[3], (1, d_model), jnp.float32),
        # BatchNorm1d(D) affine params
        "gamma": 1.0 + sc * jax.random.normal(ks[4], (1, d_model), jnp.float32),
        "beta": sc * jax.random.normal(ks[5], (1, d_model), jnp.float32),
        # pointwise_conv2: Conv1d(D, D, 1) -> stored as (D_in, D_out)
        "w2": sc * jax.random.normal(ks[6], (d_model, d_model), jnp.float32),
        "b2": sc * jax.random.normal(ks[7], (1, d_model), jnp.float32),
    }


if __name__ == "__main__":
    # small shapes; tile_t=16 forces a multi-tile time grid so the halo gather,
    # accumulator, time-split (v7x partial-stat) and padding paths are all
    # exercised; a second run uses the defaults (single time tile).
    B, T, D, K = 2, 40, 32, 5
    key = jax.random.PRNGKey(0)
    k_x, k_p = jax.random.split(key)

    x = jax.random.normal(k_x, (B, T, D), jnp.float32)
    lengths = jnp.array([T, T - 7], jnp.int32)
    pad_mask = jnp.arange(T)[None, :] >= lengths[:, None]          # (B, T) bool

    params = _init_params(k_p, D, K)
    ref = _reference(x, params, pad_mask)

    fn = jax.jit(conformer_convolution,
                 static_argnames=("tile_t", "time_splits", "matmul_dtype", "h_dtype"))

    # bf16 inter-stage storage costs ~1-2 bf16 ulp through the BN normalization,
    # hence the slightly wider tolerance vs an all-f32 intermediate.
    tol = dict(rtol=5e-3, atol=5e-3)

    out = jax.block_until_ready(fn(x, params, pad_mask, tile_t=16, time_splits=2))
    assert out.shape == (B, T, D) and out.dtype == x.dtype
    if not jnp.allclose(out, ref, **tol):
        raise AssertionError(
            f"mismatch (split path): max abs err = {float(jnp.max(jnp.abs(out - ref)))}")

    out2 = jax.block_until_ready(fn(x, params, pad_mask))
    if not jnp.allclose(out2, ref, **tol):
        raise AssertionError(
            f"mismatch (default path): max abs err = {float(jnp.max(jnp.abs(out2 - ref)))}")

    print("KERNEL_OK")
</pallas_src>

<mosaic_0001>
module attributes {stable_mosaic.version = 11 : i64} {
  func.func @_stage2_kernel(%arg0: i32, %arg1: i32, %arg2: memref<1x16x32xbf16, #tpu.memory_space<vmem>>, %arg3: memref<1x32xf32, #tpu.memory_space<vmem>>, %arg4: memref<1x32xf32, #tpu.memory_space<vmem>>, %arg5: memref<32x32xbf16, #tpu.memory_space<vmem>>, %arg6: memref<1x32xf32, #tpu.memory_space<vmem>>, %arg7: memref<1x16x32xf32, #tpu.memory_space<vmem>>) attributes {dimension_semantics = [#tpu.dimension_semantics<parallel>, #tpu.dimension_semantics<parallel>], iteration_bounds = array<i64: 2, 4>, scalar_prefetch = 0 : i64, scratch_operands = 0 : i64, tpu.core_type = #tpu.core_type<tc>, window_params = [{transform_indices = @transform_0, window_bounds = array<i64: 1, 16, 32>}, {pipeline_mode = #tpu.pipeline_mode<synchronous>, transform_indices = @transform_1, window_bounds = array<i64: 1, 32>}, {pipeline_mode = #tpu.pipeline_mode<synchronous>, transform_indices = @transform_2, window_bounds = array<i64: 1, 32>}, {pipeline_mode = #tpu.pipeline_mode<synchronous>, transform_indices = @transform_3, window_bounds = array<i64: 32, 32>}, {pipeline_mode = #tpu.pipeline_mode<synchronous>, transform_indices = @transform_4, window_bounds = array<i64: 1, 32>}, {transform_indices = @transform_5, window_bounds = array<i64: 1, 16, 32>}]} {
    %c0 = arith.constant 0 : index
    %c0_0 = arith.constant 0 : index
    %c0_1 = arith.constant 0 : index
    %0 = vector.load %arg2[%c0, %c0_0, %c0_1] : memref<1x16x32xbf16, #tpu.memory_space<vmem>>, vector<1x16x32xbf16>
    %1 = vector.shape_cast %0 : vector<1x16x32xbf16> to vector<16x32xbf16>
    %2 = arith.extf %1 : vector<16x32xbf16> to vector<16x32xf32>
    %c0_2 = arith.constant 0 : index
    %c0_3 = arith.constant 0 : index
    %3 = vector.load %arg3[%c0_2, %c0_3] : memref<1x32xf32, #tpu.memory_space<vmem>>, vector<1x32xf32>
    %4 = vector.broadcast %3 : vector<1x32xf32> to vector<16x32xf32>
    %5 = arith.mulf %2, %4 : vector<16x32xf32>
    %c0_4 = arith.constant 0 : index
    %c0_5 = arith.constant 0 : index
    %6 = vector.load %arg4[%c0_4, %c0_5] : memref<1x32xf32, #tpu.memory_space<vmem>>, vector<1x32xf32>
    %7 = vector.broadcast %6 : vector<1x32xf32> to vector<16x32xf32>
    %8 = arith.addf %5, %7 : vector<16x32xf32>
    %9 = arith.negf %8 : vector<16x32xf32>
    %10 = math.exp %9 : vector<16x32xf32>
    %cst = arith.constant 1.000000e+00 : f32
    %11 = vector.broadcast %cst : f32 to vector<16x32xf32>
    %12 = arith.addf %11, %10 : vector<16x32xf32>
    %13 = arith.divf %11, %12 : vector<16x32xf32>
    %14 = arith.mulf %8, %13 : vector<16x32xf32>
    %15 = arith.truncf %14 : vector<16x32xf32> to vector<16x32xbf16>
    %c0_6 = arith.constant 0 : index
    %c0_7 = arith.constant 0 : index
    %16 = vector.load %arg5[%c0_6, %c0_7] : memref<32x32xbf16, #tpu.memory_space<vmem>>, vector<32x32xbf16>
    %cst_8 = arith.constant dense<0.000000e+00> : vector<16x32xf32>
    %17 = tpu.matmul %15, %16, %cst_8 {dimension_numbers = #tpu.dot_dimension_numbers<[1], [0], [0], [1], [0, 0, 1, 1], [], []>} : vector<16x32xbf16>, vector<32x32xbf16>, vector<16x32xf32> -> vector<16x32xf32>
    %c0_9 = arith.constant 0 : index
    %c0_10 = arith.constant 0 : index
    %18 = vector.load %arg6[%c0_9, %c0_10] : memref<1x32xf32, #tpu.memory_space<vmem>>, vector<1x32xf32>
    %19 = vector.broadcast %18 : vector<1x32xf32> to vector<16x32xf32>
    %20 = arith.addf %17, %19 : vector<16x32xf32>
    %21 = vector.shape_cast %20 : vector<16x32xf32> to vector<1x16x32xf32>
    %c0_11 = arith.constant 0 : index
    %c0_12 = arith.constant 0 : index
    %c0_13 = arith.constant 0 : index
    %22 = vector.load %arg7[%c0_11, %c0_12, %c0_13] : memref<1x16x32xf32, #tpu.memory_space<vmem>>, vector<1x16x32xf32>
    tpu.vector_store %arg7[%c0_11, %c0_12, %c0_13], %21 {strides = array<i32>} : memref<1x16x32xf32, #tpu.memory_space<vmem>>, vector<1x16x32xf32>,
    return
  }
  func.func @transform_0(%arg0: i32, %arg1: i32) -> (i32, i32, i32) {
    %c0_i32 = arith.constant 0 : i32
    %c0_i32_0 = arith.constant 0 : i32
    return %arg0, %arg1, %c0_i32 : i32, i32, i32
  }
  func.func @transform_1(%arg0: i32, %arg1: i32) -> (i32, i32) {
    %c0_i32 = arith.constant 0 : i32
    %c0_i32_0 = arith.constant 0 : i32
    %c0_i32_1 = arith.constant 0 : i32
    return %c0_i32, %c0_i32_0 : i32, i32
  }
  func.func @transform_2(%arg0: i32, %arg1: i32) -> (i32, i32) {
    %c0_i32 = arith.constant 0 : i32
    %c0_i32_0 = arith.constant 0 : i32
    %c0_i32_1 = arith.constant 0 : i32
    return %c0_i32, %c0_i32_0 : i32, i32
  }
  func.func @transform_3(%arg0: i32, %arg1: i32) -> (i32, i32) {
    %c0_i32 = arith.constant 0 : i32
    %c0_i32_0 = arith.constant 0 : i32
    %c0_i32_1 = arith.constant 0 : i32
    return %c0_i32, %c0_i32_0 : i32, i32
  }
  func.func @transform_4(%arg0: i32, %arg1: i32) -> (i32, i32) {
    %c0_i32 = arith.constant 0 : i32
    %c0_i32_0 = arith.constant 0 : i32
    %c0_i32_1 = arith.constant 0 : i32
    return %c0_i32, %c0_i32_0 : i32, i32
  }
  func.func @transform_5(%arg0: i32, %arg1: i32) -> (i32, i32, i32) {
    %c0_i32 = arith.constant 0 : i32
    %c0_i32_0 = arith.constant 0 : i32
    return %arg0, %arg1, %c0_i32 : i32, i32, i32
  }
}

module attributes {stable_mosaic.version = 11 : i64} {
  func.func @_stage1_kernel(%arg0: i32, %arg1: i32, %arg2: i32, %arg3: memref<2xi32, #tpu.memory_space<smem>>, %arg4: memref<1x16x32xbf16, #tpu.memory_space<vmem>>, %arg5: memref<1x1x4x32xbf16, #tpu.memory_space<vmem>>, %arg6: memref<32x32xbf16, #tpu.memory_space<vmem>>, %arg7: memref<1x32xf32, #tpu.memory_space<vmem>>, %arg8: memref<32x32xbf16, #tpu.memory_space<vmem>>, %arg9: memref<1x32xf32, #tpu.memory_space<vmem>>, %arg10: memref<5x32xf32, #tpu.memory_space<vmem>>, %arg11: memref<1x16x32xbf16, #tpu.memory_space<vmem>>, %arg12: memref<1x1x32xf32, #tpu.memory_space<vmem>>, %arg13: memref<1x1x32xf32, #tpu.memory_space<vmem>>, %arg14: memref<20x32xf32, #tpu.memory_space<vmem>>) attributes {dimension_semantics = [#tpu.dimension_semantics<parallel>, #tpu.dimension_semantics<parallel>, #tpu.dimension_semantics<arbitrary>], iteration_bounds = array<i64: 2, 2, 2>, scalar_prefetch = 1 : i64, scratch_operands = 1 : i64, tpu.core_type = #tpu.core_type<tc>, window_params = [{transform_indices = @transform_0, window_bounds = array<i64: 1, 16, 32>}, {transform_indices = @transform_1, window_bounds = array<i64: 1, 1, 4, 32>}, {pipeline_mode = #tpu.pipeline_mode<synchronous>, transform_indices = @transform_2, window_bounds = array<i64: 32, 32>}, {pipeline_mode = #tpu.pipeline_mode<synchronous>, transform_indices = @transform_3, window_bounds = array<i64: 1, 32>}, {pipeline_mode = #tpu.pipeline_mode<synchronous>, transform_indices = @transform_4, window_bounds = array<i64: 32, 32>}, {pipeline_mode = #tpu.pipeline_mode<synchronous>, transform_indices = @transform_5, window_bounds = array<i64: 1, 32>}, {pipeline_mode = #tpu.pipeline_mode<synchronous>, transform_indices = @transform_6, window_bounds = array<i64: 5, 32>}, {transform_indices = @transform_7, window_bounds = array<i64: 1, 16, 32>}, {transform_indices = @transform_8, window_bounds = array<i64: 1, 1, 32>}, {transform_indices = @transform_9, window_bounds = array<i64: 1, 1, 32>}]} {
    %c2_i32 = arith.constant 2 : i32
    %0 = arith.muli %arg1, %c2_i32 : i32
    %1 = arith.addi %0, %arg2 : i32
    %c16_i32 = arith.constant 16 : i32
    %2 = arith.muli %1, %c16_i32 : i32
    %3 = arith.index_cast %arg0 : i32 to index
    %4 = memref.load %arg3[%3] : memref<2xi32, #tpu.memory_space<smem>>
    %5 = tpu.iota {dimensions = array<i32: 0>} : vector<16x1xi32>
    %6 = vector.broadcast %2 : i32 to vector<16x1xi32>
    %7 = arith.addi %5, %6 : vector<16x1xi32>
    %8 = vector.broadcast %4 : i32 to vector<16x1xi32>
    %9 = arith.cmpi slt, %7, %8 : vector<16x1xi32>
    %10 = arith.extui %9 : vector<16x1xi1> to vector<16x1xi32>
    %11 = arith.sitofp %10 : vector<16x1xi32> to vector<16x1xf32>
    %c40_i32 = arith.constant 40 : i32
    %12 = vector.broadcast %c40_i32 : i32 to vector<16x1xi32>
    %13 = arith.cmpi slt, %7, %12 : vector<16x1xi32>
    %14 = arith.extui %13 : vector<16x1xi1> to vector<16x1xi32>
    %15 = arith.sitofp %14 : vector<16x1xi32> to vector<16x1xf32>
    %c0 = arith.constant 0 : index
    %c0_0 = arith.constant 0 : index
    %c0_1 = arith.constant 0 : index
    %16 = vector.load %arg4[%c0, %c0_0, %c0_1] : memref<1x16x32xbf16, #tpu.memory_space<vmem>>, vector<1x16x32xbf16>
    %17 = vector.shape_cast %16 : vector<1x16x32xbf16> to vector<16x32xbf16>
    %c0_2 = arith.constant 0 : index
    %c0_3 = arith.constant 0 : index
    %c0_4 = arith.constant 0 : index
    %c0_5 = arith.constant 0 : index
    %18 = vector.load %arg5[%c0_2, %c0_3, %c0_4, %c0_5] : memref<1x1x4x32xbf16, #tpu.memory_space<vmem>>, vector<1x1x4x32xbf16>
    %19 = vector.shape_cast %18 : vector<1x1x4x32xbf16> to vector<4x32xbf16>
    %20 = tpu.iota {dimensions = array<i32: 0>} : vector<4x1xi32>
    %c2_i32_6 = arith.constant 2 : i32
    %21 = vector.broadcast %c2_i32_6 : i32 to vector<4x1xi32>
    %22 = arith.cmpi slt, %20, %21 : vector<4x1xi32>
    %c2_i32_7 = arith.constant 2 : i32
    %23 = arith.subi %2, %c2_i32_7 : i32
    %24 = vector.broadcast %23 : i32 to vector<4x1xi32>
    %25 = arith.addi %24, %20 : vector<4x1xi32>
    %c16_i32_8 = arith.constant 16 : i32
    %26 = arith.addi %2, %c16_i32_8 : i32
    %27 = vector.broadcast %26 : i32 to vector<4x1xi32>
    %28 = arith.addi %27, %20 : vector<4x1xi32>
    %c2_i32_9 = arith.constant 2 : i32
    %29 = vector.broadcast %c2_i32_9 : i32 to vector<4x1xi32>
    %30 = arith.subi %28, %29 : vector<4x1xi32>
    %31 = arith.select %22, %25, %30 : vector<4x1xi1>, vector<4x1xi32>
    %c0_i32 = arith.constant 0 : i32
    %32 = vector.broadcast %c0_i32 : i32 to vector<4x1xi32>
    %33 = arith.cmpi sge, %31, %32 : vector<4x1xi32>
    %34 = vector.broadcast %4 : i32 to vector<4x1xi32>
    %35 = arith.cmpi slt, %31, %34 : vector<4x1xi32>
    %36 = arith.andi %33, %35 : vector<4x1xi1>
    %37 = arith.extui %36 : vector<4x1xi1> to vector<4x1xi32>
    %38 = arith.sitofp %37 : vector<4x1xi32> to vector<4x1xf32>
    %39 = vector.extract_strided_slice %19 {offsets = [0, 0], sizes = [2, 32], strides = [1, 1]} : vector<4x32xbf16> to vector<2x32xbf16>
    %40 = vector.extract_strided_slice %19 {offsets = [2, 0], sizes = [2, 32], strides = [1, 1]} : vector<4x32xbf16> to vector<2x32xbf16>
    %41 = tpu.concatenate %39, %17, %40 in 0 : vector<2x32xbf16>, vector<16x32xbf16>, vector<2x32xbf16> -> vector<20x32xbf16>
    %42 = vector.extract_strided_slice %38 {offsets = [0, 0], sizes = [2, 1], strides = [1, 1]} : vector<4x1xf32> to vector<2x1xf32>
    %43 = vector.extract_strided_slice %38 {offsets = [2, 0], sizes = [2, 1], strides = [1, 1]} : vector<4x1xf32> to vector<2x1xf32>
    %44 = tpu.concatenate %42, %11, %43 in 0 : vector<2x1xf32>, vector<16x1xf32>, vector<2x1xf32> -> vector<20x1xf32>
    %c0_10 = arith.constant 0 : index
    %c0_11 = arith.constant 0 : index
    %45 = vector.load %arg6[%c0_10, %c0_11] : memref<32x32xbf16, #tpu.memory_space<vmem>>, vector<32x32xbf16>
    %cst = arith.constant dense<0.000000e+00> : vector<20x32xf32>
    %46 = tpu.matmul %41, %45, %cst {dimension_numbers = #tpu.dot_dimension_numbers<[1], [0], [0], [1], [0, 0, 1, 1], [], []>} : vector<20x32xbf16>, vector<32x32xbf16>, vector<20x32xf32> -> vector<20x32xf32>
    %c0_12 = arith.constant 0 : index
    %c0_13 = arith.constant 0 : index
    %47 = vector.load %arg7[%c0_12, %c0_13] : memref<1x32xf32, #tpu.memory_space<vmem>>, vector<1x32xf32>
    %48 = vector.broadcast %47 : vector<1x32xf32> to vector<20x32xf32>
    %49 = arith.addf %46, %48 : vector<20x32xf32>
    %c0_14 = arith.constant 0 : index
    %c0_15 = arith.constant 0 : index
    %50 = vector.load %arg8[%c0_14, %c0_15] : memref<32x32xbf16, #tpu.memory_space<vmem>>, vector<32x32xbf16>
    %cst_16 = arith.constant dense<0.000000e+00> : vector<20x32xf32>
    %51 = tpu.matmul %41, %50, %cst_16 {dimension_numbers = #tpu.dot_dimension_numbers<[1], [0], [0], [1], [0, 0, 1, 1], [], []>} : vector<20x32xbf16>, vector<32x32xbf16>, vector<20x32xf32> -> vector<20x32xf32>
    %c0_17 = arith.constant 0 : index
    %c0_18 = arith.constant 0 : index
    %52 = vector.load %arg9[%c0_17, %c0_18] : memref<1x32xf32, #tpu.memory_space<vmem>>, vector<1x32xf32>
    %53 = vector.broadcast %52 : vector<1x32xf32> to vector<20x32xf32>
    %54 = arith.addf %51, %53 : vector<20x32xf32>
    %55 = arith.negf %54 : vector<20x32xf32>
    %56 = math.exp %55 : vector<20x32xf32>
    %cst_19 = arith.constant 1.000000e+00 : f32
    %57 = vector.broadcast %cst_19 : f32 to vector<20x32xf32>
    %58 = arith.addf %57, %56 : vector<20x32xf32>
    %59 = arith.divf %57, %58 : vector<20x32xf32>
    %60 = arith.mulf %49, %59 : vector<20x32xf32>
    %61 = vector.broadcast %44 : vector<20x1xf32> to vector<20x32xf32>
    %62 = arith.mulf %60, %61 : vector<20x32xf32>
    %c0_20 = arith.constant 0 : index
    %c0_21 = arith.constant 0 : index
    %63 = vector.load %arg14[%c0_20, %c0_21] : memref<20x32xf32, #tpu.memory_space<vmem>>, vector<20x32xf32>
    tpu.vector_store %arg14[%c0_20, %c0_21], %62 {strides = array<i32>} : memref<20x32xf32, #tpu.memory_space<vmem>>, vector<20x32xf32>,
    %c0_22 = arith.constant 0 : index
    %c0_23 = arith.constant 0 : index
    %64 = vector.load %arg10[%c0_22, %c0_23] : memref<5x32xf32, #tpu.memory_space<vmem>>, vector<5x32xf32>
    %cst_24 = arith.constant 0.000000e+00 : f32
    %65 = vector.broadcast %cst_24 : f32 to vector<16x32xf32>
    %c0_25 = arith.constant 0 : index
    %c0_26 = arith.constant 0 : index
    %66 = vector.load %arg14[%c0_25, %c0_26] : memref<20x32xf32, #tpu.memory_space<vmem>>, vector<16x32xf32>
    %67 = vector.extract_strided_slice %64 {offsets = [0, 0], sizes = [1, 32], strides = [1, 1]} : vector<5x32xf32> to vector<1x32xf32>
    %68 = vector.broadcast %67 : vector<1x32xf32> to vector<16x32xf32>
    %69 = arith.mulf %66, %68 : vector<16x32xf32>
    %70 = arith.addf %65, %69 : vector<16x32xf32>
    %c1 = arith.constant 1 : index
    %c0_27 = arith.constant 0 : index
    %71 = vector.load %arg14[%c1, %c0_27] : memref<20x32xf32, #tpu.memory_space<vmem>>, vector<16x32xf32>
    %72 = vector.extract_strided_slice %64 {offsets = [1, 0], sizes = [1, 32], strides = [1, 1]} : vector<5x32xf32> to vector<1x32xf32>
    %73 = vector.broadcast %72 : vector<1x32xf32> to vector<16x32xf32>
    %74 = arith.mulf %71, %73 : vector<16x32xf32>
    %75 = arith.addf %70, %74 : vector<16x32xf32>
    %c2 = arith.constant 2 : index
    %c0_28 = arith.constant 0 : index
    %76 = vector.load %arg14[%c2, %c0_28] : memref<20x32xf32, #tpu.memory_space<vmem>>, vector<16x32xf32>
    %77 = vector.extract_strided_slice %64 {offsets = [2, 0], sizes = [1, 32], strides = [1, 1]} : vector<5x32xf32> to vector<1x32xf32>
    %78 = vector.broadcast %77 : vector<1x32xf32> to vector<16x32xf32>
    %79 = arith.mulf %76, %78 : vector<16x32xf32>
    %80 = arith.addf %75, %79 : vector<16x32xf32>
    %c3 = arith.constant 3 : index
    %c0_29 = arith.constant 0 : index
    %81 = vector.load %arg14[%c3, %c0_29] : memref<20x32xf32, #tpu.memory_space<vmem>>, vector<16x32xf32>
    %82 = vector.extract_strided_slice %64 {offsets = [3, 0], sizes = [1, 32], strides = [1, 1]} : vector<5x32xf32> to vector<1x32xf32>
    %83 = vector.broadcast %82 : vector<1x32xf32> to vector<16x32xf32>
    %84 = arith.mulf %81, %83 : vector<16x32xf32>
    %85 = arith.addf %80, %84 : vector<16x32xf32>
    %c4 = arith.constant 4 : index
    %c0_30 = arith.constant 0 : index
    %86 = vector.load %arg14[%c4, %c0_30] : memref<20x32xf32, #tpu.memory_space<vmem>>, vector<16x32xf32>
    %87 = vector.extract_strided_slice %64 {offsets = [4, 0], sizes = [1, 32], strides = [1, 1]} : vector<5x32xf32> to vector<1x32xf32>
    %88 = vector.broadcast %87 : vector<1x32xf32> to vector<16x32xf32>
    %89 = arith.mulf %86, %88 : vector<16x32xf32>
    %90 = arith.addf %85, %89 : vector<16x32xf32>
    %91 = vector.broadcast %15 : vector<16x1xf32> to vector<16x32xf32>
    %92 = arith.mulf %90, %91 : vector<16x32xf32>
    %c0_i32_31 = arith.constant 0 : i32
    %93 = arith.cmpi eq, %arg2, %c0_i32_31 : i32
    %94 = arith.extui %93 : i1 to i32
    %c0_i32_32 = arith.constant 0 : i32
    %95 = arith.cmpi ne, %94, %c0_i32_32 : i32
    scf.if %95 {
      %cst_50 = arith.constant 0.000000e+00 : f32
      %112 = vector.broadcast %cst_50 : f32 to vector<1x1x32xf32>
      %c0_51 = arith.constant 0 : index
      %c0_52 = arith.constant 0 : index
      %c0_53 = arith.constant 0 : index
      %113 = vector.load %arg12[%c0_51, %c0_52, %c0_53] : memref<1x1x32xf32, #tpu.memory_space<vmem>>, vector<1x1x32xf32>
      tpu.vector_store %arg12[%c0_51, %c0_52, %c0_53], %112 {strides = array<i32>} : memref<1x1x32xf32, #tpu.memory_space<vmem>>, vector<1x1x32xf32>,
      %cst_54 = arith.constant 0.000000e+00 : f32
      %114 = vector.broadcast %cst_54 : f32 to vector<1x1x32xf32>
      %c0_55 = arith.constant 0 : index
      %c0_56 = arith.constant 0 : index
      %c0_57 = arith.constant 0 : index
      %115 = vector.load %arg13[%c0_55, %c0_56, %c0_57] : memref<1x1x32xf32, #tpu.memory_space<vmem>>, vector<1x1x32xf32>
      tpu.vector_store %arg13[%c0_55, %c0_56, %c0_57], %114 {strides = array<i32>} : memref<1x1x32xf32, #tpu.memory_space<vmem>>, vector<1x1x32xf32>,
    } else {
    }
    %c0_33 = arith.constant 0 : index
    %c0_34 = arith.constant 0 : index
    %c0_35 = arith.constant 0 : index
    %96 = vector.load %arg12[%c0_33, %c0_34, %c0_35] : memref<1x1x32xf32, #tpu.memory_space<vmem>>, vector<1x1x32xf32>
    %cst_36 = arith.constant dense<0.000000e+00> : vector<32xf32>
    %97 = vector.multi_reduction <add>, %92, %cst_36 [0] : vector<16x32xf32> to vector<32xf32>
    %98 = vector.shape_cast %97 : vector<32xf32> to vector<1x32xf32>
    %99 = vector.shape_cast %98 : vector<1x32xf32> to vector<1x1x32xf32>
    %100 = arith.addf %96, %99 : vector<1x1x32xf32>
    %c0_37 = arith.constant 0 : index
    %c0_38 = arith.constant 0 : index
    %c0_39 = arith.constant 0 : index
    %101 = vector.load %arg12[%c0_37, %c0_38, %c0_39] : memref<1x1x32xf32, #tpu.memory_space<vmem>>, vector<1x1x32xf32>
    tpu.vector_store %arg12[%c0_37, %c0_38, %c0_39], %100 {strides = array<i32>} : memref<1x1x32xf32, #tpu.memory_space<vmem>>, vector<1x1x32xf32>,
    %c0_40 = arith.constant 0 : index
    %c0_41 = arith.constant 0 : index
    %c0_42 = arith.constant 0 : index
    %102 = vector.load %arg13[%c0_40, %c0_41, %c0_42] : memref<1x1x32xf32, #tpu.memory_space<vmem>>, vector<1x1x32xf32>
    %103 = arith.mulf %92, %90 : vector<16x32xf32>
    %cst_43 = arith.constant dense<0.000000e+00> : vector<32xf32>
    %104 = vector.multi_reduction <add>, %103, %cst_43 [0] : vector<16x32xf32> to vector<32xf32>
    %105 = vector.shape_cast %104 : vector<32xf32> to vector<1x32xf32>
    %106 = vector.shape_cast %105 : vector<1x32xf32> to vector<1x1x32xf32>
    %107 = arith.addf %102, %106 : vector<1x1x32xf32>
    %c0_44 = arith.constant 0 : index
    %c0_45 = arith.constant 0 : index
    %c0_46 = arith.constant 0 : index
    %108 = vector.load %arg13[%c0_44, %c0_45, %c0_46] : memref<1x1x32xf32, #tpu.memory_space<vmem>>, vector<1x1x32xf32>
    tpu.vector_store %arg13[%c0_44, %c0_45, %c0_46], %107 {strides = array<i32>} : memref<1x1x32xf32, #tpu.memory_space<vmem>>, vector<1x1x32xf32>,
    %109 = vector.shape_cast %90 : vector<16x32xf32> to vector<1x16x32xf32>
    %110 = arith.truncf %109 : vector<1x16x32xf32> to vector<1x16x32xbf16>
    %c0_47 = arith.constant 0 : index
    %c0_48 = arith.constant 0 : index
    %c0_49 = arith.constant 0 : index
    %111 = vector.load %arg11[%c0_47, %c0_48, %c0_49] : memref<1x16x32xbf16, #tpu.memory_space<vmem>>, vector<1x16x32xbf16>
    tpu.vector_store %arg11[%c0_47, %c0_48, %c0_49], %110 {strides = array<i32>} : memref<1x16x32xbf16, #tpu.memory_space<vmem>>, vector<1x16x32xbf16>,
    return
  }
  func.func @transform_0(%arg0: i32, %arg1: i32, %arg2: i32, %arg3: memref<2xi32, #tpu.memory_space<smem>>) -> (i32, i32, i32) {
    %c2_i32 = arith.constant 2 : i32
    %0 = arith.muli %arg1, %c2_i32 : i32
    %1 = arith.addi %0, %arg2 : i32
    %c0_i32 = arith.constant 0 : i32
    %c0_i32_0 = arith.constant 0 : i32
    return %arg0, %1, %c0_i32 : i32, i32, i32
  }
  func.func @transform_1(%arg0: i32, %arg1: i32, %arg2: i32, %arg3: memref<2xi32, #tpu.memory_space<smem>>) -> (i32, i32, i32, i32) {
    %c2_i32 = arith.constant 2 : i32
    %0 = arith.muli %arg1, %c2_i32 : i32
    %1 = arith.addi %0, %arg2 : i32
    %c0_i32 = arith.constant 0 : i32
    %c0_i32_0 = arith.constant 0 : i32
    %c0_i32_1 = arith.constant 0 : i32
    return %arg0, %1, %c0_i32, %c0_i32_0 : i32, i32, i32, i32
  }
  func.func @transform_2(%arg0: i32, %arg1: i32, %arg2: i32, %arg3: memref<2xi32, #tpu.memory_space<smem>>) -> (i32, i32) {
    %c0_i32 = arith.constant 0 : i32
    %c0_i32_0 = arith.constant 0 : i32
    %c0_i32_1 = arith.constant 0 : i32
    return %c0_i32, %c0_i32_0 : i32, i32
  }
  func.func @transform_3(%arg0: i32, %arg1: i32, %arg2: i32, %arg3: memref<2xi32, #tpu.memory_space<smem>>) -> (i32, i32) {
    %c0_i32 = arith.constant 0 : i32
    %c0_i32_0 = arith.constant 0 : i32
    %c0_i32_1 = arith.constant 0 : i32
    return %c0_i32, %c0_i32_0 : i32, i32
  }
  func.func @transform_4(%arg0: i32, %arg1: i32, %arg2: i32, %arg3: memref<2xi32, #tpu.memory_space<smem>>) -> (i32, i32) {
    %c0_i32 = arith.constant 0 : i32
    %c0_i32_0 = arith.constant 0 : i32
    %c0_i32_1 = arith.constant 0 : i32
    return %c0_i32, %c0_i32_0 : i32, i32
  }
  func.func @transform_5(%arg0: i32, %arg1: i32, %arg2: i32, %arg3: memref<2xi32, #tpu.memory_space<smem>>) -> (i32, i32) {
    %c0_i32 = arith.constant 0 : i32
    %c0_i32_0 = arith.constant 0 : i32
    %c0_i32_1 = arith.constant 0 : i32
    return %c0_i32, %c0_i32_0 : i32, i32
  }
  func.func @transform_6(%arg0: i32, %arg1: i32, %arg2: i32, %arg3: memref<2xi32, #tpu.memory_space<smem>>) -> (i32, i32) {
    %c0_i32 = arith.constant 0 : i32
    %c0_i32_0 = arith.constant 0 : i32
    %c0_i32_1 = arith.constant 0 : i32
    return %c0_i32, %c0_i32_0 : i32, i32
  }
  func.func @transform_7(%arg0: i32, %arg1: i32, %arg2: i32, %arg3: memref<2xi32, #tpu.memory_space<smem>>) -> (i32, i32, i32) {
    %c2_i32 = arith.constant 2 : i32
    %0 = arith.muli %arg1, %c2_i32 : i32
    %1 = arith.addi %0, %arg2 : i32
    %c0_i32 = arith.constant 0 : i32
    %c0_i32_0 = arith.constant 0 : i32
    return %arg0, %1, %c0_i32 : i32, i32, i32
  }
  func.func @transform_8(%arg0: i32, %arg1: i32, %arg2: i32, %arg3: memref<2xi32, #tpu.memory_space<smem>>) -> (i32, i32, i32) {
    %c2_i32 = arith.constant 2 : i32
    %0 = arith.muli %arg0, %c2_i32 : i32
    %1 = arith.addi %0, %arg1 : i32
    %c0_i32 = arith.constant 0 : i32
    %c0_i32_0 = arith.constant 0 : i32
    %c0_i32_1 = arith.constant 0 : i32
    return %1, %c0_i32, %c0_i32_0 : i32, i32, i32
  }
  func.func @transform_9(%arg0: i32, %arg1: i32, %arg2: i32, %arg3: memref<2xi32, #tpu.memory_space<smem>>) -> (i32, i32, i32) {
    %c2_i32 = arith.constant 2 : i32
    %0 = arith.muli %arg0, %c2_i32 : i32
    %1 = arith.addi %0, %arg1 : i32
    %c0_i32 = arith.constant 0 : i32
    %c0_i32_0 = arith.constant 0 : i32
    %c0_i32_1 = arith.constant 0 : i32
    return %1, %c0_i32, %c0_i32_0 : i32, i32, i32
  }
}

</mosaic_0001>

<llo_original>
// kernel: conformer_convolution.3
$region0: #{conformer_convolution.3}
  #allocation0 [shape = 'u32[]', space=smem, size = 0x4, offset = 0x4, fixed_abs, tag = 'smem constant byte address 0x4 - core index']
  #allocation1 [shape = 'u32[144,128]{1,0:T(1,128)}', space=vmem, size = 0x12000, scoped, tag = 'internal scratch']
  %s0 = inlined_call_operand.vmem [shape: bf16[2,64,32], index: 0, kind: input, shape index: {}]
  %s1 = inlined_call_operand.vmem [shape: f32[1,32], index: 1, kind: input, shape index: {}]
  %s2 = inlined_call_operand.vmem [shape: f32[1,32], index: 2, kind: input, shape index: {}]
  %s3 = inlined_call_operand.vmem [shape: bf16[32,32], index: 3, kind: input, shape index: {}]
  %s4 = inlined_call_operand.vmem [shape: f32[1,32], index: 4, kind: input, shape index: {}]
  %s5 = inlined_call_operand.vmem [shape: f32[2,64,32], index: 5, kind: output, shape index: {}]
  %s6 = sld [smem:[#allocation0]]
  $region53: #{conformer_convolution.3} parent=0
    _
  %s8 = ssub.s32 1, %s6
  %s9 = scalar_select 0, %s8, %s6
  loop: start=0, step=1, limit=10
  $region2: #{conformer_convolution.3} parent=0 // loop_pre_header
    _
  $region3: #{conformer_convolution.3} parent=0 // loop_header
    %s11 = sphi 0, %s15
    %p12 = scmp.ge.s32.totalorder %s11, 10
    %s18 = sphi 0, %s30
    %s19 = sphi 0, %s26
    %s20 = sphi 0, %s18
    %s21 = sphi 0, %s19
    %s22 = sphi 0, %s20
    %s23 = sphi 0, %s21
    %s35 = sphi 0, %s37
    %s38 = sphi 0, %s35
    %s39 = sphi 0, %s38
    %s55 = sphi 0, %s39
    %s59 = sphi 0, %s59
    %s61 = sphi 0, %s59
    %s62 = sphi 0, %s61
    %s76 = sphi 0, %s62
    %s80 = sphi 0, %s80
    %s82 = sphi 0, %s80
    %s83 = sphi 0, %s82
    %s97 = sphi 0, %s83
    %s101 = sphi 0, %s101
    %s103 = sphi 0, %s101
    %s104 = sphi 0, %s103
    %s118 = sphi 0, %s104
    %s122 = sphi 0, %s122
    %s124 = sphi 0, %s122
    %s125 = sphi 0, %s124
    %s139 = sphi 0, %s125
    %s147 = sphi 0, %s149
    %s150 = sphi 0, %s147
    %s151 = sphi 0, %s150
    %s167 = sphi 0, %s151
  $region4: #{conformer_convolution.3} parent=0 // loop_header_branch
    %14 = sbr.rel (%p12) target = $region8
  $region5: #{conformer_convolution.3} parent=0 // loop_body
    %s16 = ssub.s32 %s11, 1
    %s17 = ssub.s32 %s11, 2
    %s24 = sadd.s32 1, %s19
    %p25 = scmp.ge.s32.totalorder %s24, 4
    %s26 = scalar_select %p25, 0, %s24
    %s27 = sadd.s32 1, %s18
    %s28 = scalar_select %p25, %s27, %s18
    %p29 = scmp.ge.s32.totalorder %s28, 2
    %s30 = scalar_select %p29, 0, %s28
    %s31 = ssub.s32 %s18, %s30
    %s32 = ssub.s32 %s19, %s26
    %s33 = sor.u32 %s31, %s32
    %p34 = scmp.eq.s32.totalorder %s33, 0
    %s36 = sadd.s32 %s35, 1
    %s37 = scalar_select %p34, %s35, %s36
    %p40 = pneg %p34
    %p41 = scmp.eq.s32.totalorder %s11, 7
    %p42 = por %p40, %p41
    %p43 = scmp.ne.s32.totalorder %s35, %s38
    %p44 = scmp.eq.s32.totalorder %s11, 0
    %p45 = por %p43, %p44
    %p46 = scmp.ne.s32.totalorder %s35, %s38
    %p47 = scmp.eq.s32.totalorder %s16, 7
    %p48 = por %p46, %p47
    %p49 = scmp.ne.s32.totalorder %s38, %s39
    %p50 = scmp.eq.s32.totalorder %s16, 0
    %p51 = por %p49, %p50
    %p52 = scmp.ne.s32.totalorder %s38, %s39
    %p53 = scmp.eq.s32.totalorder %s17, 7
    %p54 = por %p52, %p53
    %p56 = scmp.ne.s32.totalorder %s39, %s55
    %p57 = scmp.eq.s32.totalorder %s17, 0
    %p58 = por %p56, %p57
    %s60 = sadd.s32 %s59, 1
    %p63 = scmp.eq.s32.totalorder %s11, 7
    %p64 = scmp.ne.s32.totalorder %s59, %s61
    %p65 = scmp.eq.s32.totalorder %s11, 0
    %p66 = por %p64, %p65
    %p67 = scmp.ne.s32.totalorder %s59, %s61
    %p68 = scmp.eq.s32.totalorder %s16, 7
    %p69 = por %p67, %p68
    %p70 = scmp.ne.s32.totalorder %s61, %s62
    %p71 = scmp.eq.s32.totalorder %s16, 0
    %p72 = por %p70, %p71
    %p73 = scmp.ne.s32.totalorder %s61, %s62
    %p74 = scmp.eq.s32.totalorder %s17, 7
    %p75 = por %p73, %p74
    %p77 = scmp.ne.s32.totalorder %s62, %s76
    %p78 = scmp.eq.s32.totalorder %s17, 0
    %p79 = por %p77, %p78
    %s81 = sadd.s32 %s80, 1
    %p84 = scmp.eq.s32.totalorder %s11, 7
    %p85 = scmp.ne.s32.totalorder %s80, %s82
    %p86 = scmp.eq.s32.totalorder %s11, 0
    %p87 = por %p85, %p86
    %p88 = scmp.ne.s32.totalorder %s80, %s82
    %p89 = scmp.eq.s32.totalorder %s16, 7
    %p90 = por %p88, %p89
    %p91 = scmp.ne.s32.totalorder %s82, %s83
    %p92 = scmp.eq.s32.totalorder %s16, 0
    %p93 = por %p91, %p92
    %p94 = scmp.ne.s32.totalorder %s82, %s83
    %p95 = scmp.eq.s32.totalorder %s17, 7
    %p96 = por %p94, %p95
    %p98 = scmp.ne.s32.totalorder %s83, %s97
    %p99 = scmp.eq.s32.totalorder %s17, 0
    %p100 = por %p98, %p99
    %s102 = sadd.s32 %s101, 1
    %p105 = scmp.eq.s32.totalorder %s11, 7
    %p106 = scmp.ne.s32.totalorder %s101, %s103
    %p107 = scmp.eq.s32.totalorder %s11, 0
    %p108 = por %p106, %p107
    %p109 = scmp.ne.s32.totalorder %s101, %s103
    %p110 = scmp.eq.s32.totalorder %s16, 7
    %p111 = por %p109, %p110
    %p112 = scmp.ne.s32.totalorder %s103, %s104
    %p113 = scmp.eq.s32.totalorder %s16, 0
    %p114 = por %p112, %p113
    %p115 = scmp.ne.s32.totalorder %s103, %s104
    %p116 = scmp.eq.s32.totalorder %s17, 7
    %p117 = por %p115, %p116
    %p119 = scmp.ne.s32.totalorder %s104, %s118
    %p120 = scmp.eq.s32.totalorder %s17, 0
    %p121 = por %p119, %p120
    %s123 = sadd.s32 %s122, 1
    %p126 = scmp.eq.s32.totalorder %s11, 7
    %p127 = scmp.ne.s32.totalorder %s122, %s124
    %p128 = scmp.eq.s32.totalorder %s11, 0
    %p129 = por %p127, %p128
    %p130 = scmp.ne.s32.totalorder %s122, %s124
    %p131 = scmp.eq.s32.totalorder %s16, 7
    %p132 = por %p130, %p131
    %p133 = scmp.ne.s32.totalorder %s124, %s125
    %p134 = scmp.eq.s32.totalorder %s16, 0
    %p135 = por %p133, %p134
    %p136 = scmp.ne.s32.totalorder %s124, %s125
    %p137 = scmp.eq.s32.totalorder %s17, 7
    %p138 = por %p136, %p137
    %p140 = scmp.ne.s32.totalorder %s125, %s139
    %p141 = scmp.eq.s32.totalorder %s17, 0
    %p142 = por %p140, %p141
    %s143 = ssub.s32 %s18, %s30
    %s144 = ssub.s32 %s19, %s26
    %s145 = sor.u32 %s143, %s144
    %p146 = scmp.eq.s32.totalorder %s145, 0
    %s148 = sadd.s32 %s147, 1
    %s149 = scalar_select %p146, %s147, %s148
    %p152 = pneg %p146
    %p153 = scmp.eq.s32.totalorder %s11, 7
    %p154 = por %p152, %p153
    %p155 = scmp.ne.s32.totalorder %s147, %s150
    %p156 = scmp.eq.s32.totalorder %s11, 0
    %p157 = por %p155, %p156
    %p158 = scmp.ne.s32.totalorder %s147, %s150
    %p159 = scmp.eq.s32.totalorder %s16, 7
    %p160 = por %p158, %p159
    %p161 = scmp.ne.s32.totalorder %s150, %s151
    %p162 = scmp.eq.s32.totalorder %s16, 0
    %p163 = por %p161, %p162
    %p164 = scmp.ne.s32.totalorder %s150, %s151
    %p165 = scmp.eq.s32.totalorder %s17, 7
    %p166 = por %p164, %p165
    %p168 = scmp.ne.s32.totalorder %s151, %s167
    %p169 = scmp.eq.s32.totalorder %s17, 0
    %p170 = por %p168, %p169
    %p171 = scmp.le.s32.totalorder 1, %s11
    %p172 = scmp.lt.s32.totalorder %s11, 9
    %p173 = pnand %p171, %p172
    %p174 = pneg %p173
    // Predicated region
    $region9: #{conformer_convolution.3} parent=5 // pred_check
      _
    $region10: #{conformer_convolution.3} parent=5 // pred_check_branch
      %176 = sbr.rel (%p173) target = $region12
    $region11: #{conformer_convolution.3} parent=5 // pred_region
      %s177 = ssub.s32 %s11, 1
      // Predicated region
      $region13: #{conformer_convolution.3} parent=11 // pred_check
        %p178 = pneg %p72
      $region14: #{conformer_convolution.3} parent=11 // pred_check_branch
        %180 = sbr.rel (%p178) target = $region16
      $region15: #{conformer_convolution.3} parent=11 // pred_region
        _
      $region16: #{conformer_convolution.3} parent=11 // pred_fallthru
        _
      // Predicated region
      $region17: #{conformer_convolution.3} parent=11 // pred_check
        %p181 = pneg %p93
      $region18: #{conformer_convolution.3} parent=11 // pred_check_branch
        %183 = sbr.rel (%p181) target = $region20
      $region19: #{conformer_convolution.3} parent=11 // pred_region
        _
      $region20: #{conformer_convolution.3} parent=11 // pred_fallthru
        _
      // Predicated region
      $region21: #{conformer_convolution.3} parent=11 // pred_check
        %p184 = pneg %p114
      $region22: #{conformer_convolution.3} parent=11 // pred_check_branch
        %186 = sbr.rel (%p184) target = $region24
      $region23: #{conformer_convolution.3} parent=11 // pred_region
        _
      $region24: #{conformer_convolution.3} parent=11 // pred_fallthru
        _
      // Predicated region
      $region25: #{conformer_convolution.3} parent=11 // pred_check
        %p187 = pneg %p135
      $region26: #{conformer_convolution.3} parent=11 // pred_check_branch
        %189 = sbr.rel (%p187) target = $region28
      $region27: #{conformer_convolution.3} parent=11 // pred_region
        _
      $region28: #{conformer_convolution.3} parent=11 // pred_fallthru
        _
    $region12: #{conformer_convolution.3} parent=5 // pred_fallthru
      _
    %p190 = scmp.lt.s32.totalorder %s11, 8
    // Predicated region
    $region29: #{conformer_convolution.3} parent=5 // pred_check
      %p191 = pneg %p190
    $region30: #{conformer_convolution.3} parent=5 // pred_check_branch
      %193 = sbr.rel (%p191) target = $region32
    $region31: #{conformer_convolution.3} parent=5 // pred_region
      // Predicated region
      $region33: #{conformer_convolution.3} parent=31 // pred_check
        %p194 = pneg %p45
      $region34: #{conformer_convolution.3} parent=31 // pred_check_branch
        %196 = sbr.rel (%p194) target = $region36
      $region35: #{conformer_convolution.3} parent=31 // pred_region
        %s197 = smul.u32 2, %s19
        %p198 = scmp.lt.s32.totalorder %s18, 1
        %s199 = scalar_select %p198, %s18, 1
        %p200 = scmp.lt.s32.totalorder %s197, 7
        %s201 = scalar_select %p200, %s197, 7
        %s202 = smul.addr %s199, 8
        %s203 = sadd.s32 %s201, %s202
        %s204 = smul.addr %s203, 4
        %s205 = scalar_lea.vmem %s0, %s204
        %s206 = smul.u32 2, %s19
      $region36: #{conformer_convolution.3} parent=31 // pred_fallthru
        _
    $region32: #{conformer_convolution.3} parent=5 // pred_fallthru
      _
    %p207 = scmp.le.s32.totalorder 1, %s11
    %p208 = scmp.lt.s32.totalorder %s11, 9
    %p209 = pnand %p207, %p208
    %p210 = pneg %p209
    // Predicated region
    $region37: #{conformer_convolution.3} parent=5 // pred_check
      _
    $region38: #{conformer_convolution.3} parent=5 // pred_check_branch
      %212 = sbr.rel (%p209) target = $region40
    $region39: #{conformer_convolution.3} parent=5 // pred_region
      %s213 = ssub.s32 %s11, 1
      %s214 = smul.u32 2, %s21
      %p215 = scmp.lt.s32.totalorder %s20, 1
      %s216 = scalar_select %p215, %s20, 1
      %p217 = scmp.lt.s32.totalorder %s214, 7
      %s218 = scalar_select %p217, %s214, 7
      %s219 = smul.addr %s216, 8
      %s220 = sadd.s32 %s218, %s219
      %s221 = smul.addr %s220, 4
      %s222 = scalar_lea.vmem %s0, %s221
      %p223 = pneg %p51
      %p224 = pneg %p48
      %p225 = pneg %p72
      %p226 = pneg %p69
      %p227 = pneg %p93
      %p228 = pneg %p90
      %p229 = pneg %p114
      %p230 = pneg %p111
      %p231 = pneg %p135
      %p232 = pneg %p132
      %p233 = pneg %p163
      %p234 = pneg %p160
      %s235 = smul.u32 2, %s21
      %p236 = scmp.lt.s32.totalorder %s20, 1
      %s237 = scalar_select %p236, %s20, 1
      %p238 = scmp.lt.s32.totalorder %s235, 7
      %s239 = scalar_select %p238, %s235, 7
      %s240 = smul.addr %s237, 8
      %s241 = sadd.s32 %s239, %s240
      %s242 = smul.addr %s241, 8
      %s243 = scalar_lea.vmem %s5, %s242
      %s244 = smul.u32 2, %s21
      %p245 = scmp.lt.s32.totalorder %s20, 1
      %s246 = scalar_select %p245, %s20, 1
      %p247 = scmp.lt.s32.totalorder %s244, 7
      %s248 = scalar_select %p247, %s244, 7
      %s249 = smul.addr %s246, 8
      %s250 = sadd.s32 %s248, %s249
      %s251 = smul.addr %s250, 4
      %s252 = scalar_lea.vmem %s0, %s251
      %s253 = smul.u32 2, %s21
      %s254 = smul.u32 2, %s21
      %p255 = scmp.lt.s32.totalorder %s20, 1
      %s256 = scalar_select %p255, %s20, 1
      %p257 = scmp.lt.s32.totalorder %s254, 7
      %s258 = scalar_select %p257, %s254, 7
      %s259 = smul.addr %s256, 8
      %s260 = sadd.s32 %s258, %s259
      %s261 = smul.addr %s260, 8
      %s262 = scalar_lea.vmem %s5, %s261
      %s263 = smul.u32 2, %s21
      %v265 = vld [vmem:[%s252] sm:$0xf]
      %v266 = vld [vmem:[%s252 + $0x4] sm:$0xf]
      %v267 = vunpack.c.l.bf16 %v265
      %v268 = vunpack.c.l.bf16 %v266
      %v269 = vld [vmem:[%s1] sm:$0x1]
      %v271 = vlaneseq
      %v272 = vshrl.u32 %v271, 7
      %v273 = vsub.s32 0, %v272
      %v274 = vrot.slane %v269, %v273
      %v276 = vmul.f32 %v267, %v274
      %v277 = vmul.f32 %v268, %v274
      %v278 = vld [vmem:[%s2] sm:$0x1]
      %v280 = vlaneseq
      %v281 = vshrl.u32 %v280, 7
      %v282 = vsub.s32 0, %v281
      %v283 = vrot.slane %v278, %v282
      %v285 = vadd.f32 %v276, %v283
      %v286 = vadd.f32 %v277, %v283
      %v287 = vxor.u32 %v285, 2147483648
      %v288 = vxor.u32 %v286, 2147483648
      %v289 = vmul.f32 %v287, 1.442695
      %v290 = vpow.pop %v289
      %v291 = vmul.f32 %v288, 1.442695
      %v292 = vpow.pop %v291
      %v293 = vadd.f32 %v290, 1.0
      %v294 = vadd.f32 %v292, 1.0
      %v295 = vrcp.pop %v293
      %v296 = vmul.f32 1.0, %v295
      %v297 = vrcp.pop %v294
      %v298 = vmul.f32 1.0, %v297
      %v299 = vmul.f32 %v285, %v296
      %v300 = vmul.f32 %v286, %v298
      %v301 = vpack.c.bf16 %v300, %v299
      %v302 = vld [vmem:[%s3] sm:$0xf]
      %v303 = vld [vmem:[%s3 + $0x4] sm:$0xf]
      %v304 = vld [vmem:[%s3 + $0x8] sm:$0xf]
      %v305 = vld [vmem:[%s3 + $0xc] sm:$0xf]
      %v306 = vld [vmem:[%s4] sm:$0x1]
      %v308 = vlaneseq
      %v309 = vshrl.u32 %v308, 7
      %v310 = vsub.s32 0, %v309
      %v311 = vrot.slane %v306, %v310
      %v317 = vunpack.c.l.b16 %v302
      %v318 = vunpack.c.l.b16 %v303
      %v319 = vunpack.c.l.b16 %v304
      %v320 = vunpack.c.l.b16 %v305
      %v321 = vpack.c.b16 %v318, %v317
      %v322 = vpack.c.b16 %v320, %v319
      %vm325 = vcmask 261120
      %v327 = vsel %vm325, %v301, 0
      %329 = vmatprep.subr.bf16.mxu0 0
      %330 = vmatpush1.bf16.msra.mxu0 %v321
      %331 = vmatprep.subr.bf16.mxu0 0
      %332 = vmatpush1.bf16.msra.mxu0 %v322
      %333 = vmatprep.subr.bf16.mxu0 0
      %334 = vmatpush1.bf16.msra.mxu0 0
      %335 = vmatprep.subr.bf16.mxu0 0
      %336 = vmatpush1.bf16.msra.mxu0 0
      %337 = vmatprep.subr.bf16.mxu0 0
      %338 = vmatpush1.bf16.msra.mxu0 0
      %339 = vmatprep.subr.bf16.mxu0 0
      %340 = vmatpush1.bf16.msra.mxu0 0
      %341 = vmatprep.subr.bf16.mxu0 0
      %342 = vmatpush1.bf16.msra.mxu0 0
      %343 = vmatprep.subr.bf16.mxu0 0
      %344 = vmatpush1.bf16.msra.mxu0 0
      %345 = vmatprep.subr.bf16.mxu0 0
      %346 = vmatpush1.bf16.msra.mxu0 0
      %347 = vmatprep.subr.bf16.mxu0 0
      %348 = vmatpush1.bf16.msra.mxu0 0
      %349 = vmatprep.subr.bf16.mxu0 0
      %350 = vmatpush1.bf16.msra.mxu0 0
      %351 = vmatprep.subr.bf16.mxu0 0
      %352 = vmatpush1.bf16.msra.mxu0 0
      %353 = vmatprep.subr.bf16.mxu0 0
      %354 = vmatpush1.bf16.msra.mxu0 0
      %355 = vmatprep.subr.bf16.mxu0 0
      %356 = vmatpush1.bf16.msra.mxu0 0
      %357 = vmatprep.subr.bf16.mxu0 0
      %358 = vmatpush1.bf16.msra.mxu0 0
      %359 = vmatprep.subr.bf16.mxu0 0
      %360 = vmatpush1.bf16.msra.mxu0 0
      %361 = vmatprep.mubr.bf16.mxu0 0
      %362 = vmatmul.mubr.bf16.gmra.mrb[0].mxu0 %v327
      %v363 = vpop.f32.mrb[0].mxu0
      %v364 = vadd.f32 %v311, %v363
      %v365 = vpop.f32.mrb[0].mxu0
      %v366 = vpop.f32.mrb[0].mxu0
      %v367 = vadd.f32 %v311, %v366
      %v368 = vpop.f32.mrb[0].mxu0
      %369 = vdwg.mxu0
      %370 = vst.msk [vmem:[%s262] sm:$0xff] %vm325, %v364
      %371 = vst.msk [vmem:[%s262 + $0x8] sm:$0xff] %vm325, %v367
      %s372 = smul.u32 2, %s21
      %p373 = scmp.lt.s32.totalorder %s20, 1
      %s374 = scalar_select %p373, %s20, 1
      %p375 = scmp.lt.s32.totalorder %s372, 7
      %s376 = scalar_select %p375, %s372, 7
      %s377 = smul.addr %s374, 8
      %s378 = sadd.s32 %s376, %s377
      %s379 = smul.addr %s378, 8
      %s380 = scalar_lea.vmem %s5, %s379
      // Predicated region
      $region41: #{conformer_convolution.3} parent=39 // pred_check
        %p381 = pneg %p160
      $region42: #{conformer_convolution.3} parent=39 // pred_check_branch
        %383 = sbr.rel (%p381) target = $region44
      $region43: #{conformer_convolution.3} parent=39 // pred_region
        %s384 = smul.u32 2, %s21
      $region44: #{conformer_convolution.3} parent=39 // pred_fallthru
        _
    $region40: #{conformer_convolution.3} parent=5 // pred_fallthru
      _
    %p385 = scmp.le.s32.totalorder 2, %s11
    // Predicated region
    $region45: #{conformer_convolution.3} parent=5 // pred_check
      %p386 = pneg %p385
    $region46: #{conformer_convolution.3} parent=5 // pred_check_branch
      %388 = sbr.rel (%p386) target = $region48
    $region47: #{conformer_convolution.3} parent=5 // pred_region
      %s389 = ssub.s32 %s11, 2
      // Predicated region
      $region49: #{conformer_convolution.3} parent=47 // pred_check
        %p390 = pneg %p166
      $region50: #{conformer_convolution.3} parent=47 // pred_check_branch
        %392 = sbr.rel (%p390) target = $region52
      $region51: #{conformer_convolution.3} parent=47 // pred_region
        %s393 = smul.u32 2, %s23
        %p394 = scmp.lt.s32.totalorder %s22, 1
        %s395 = scalar_select %p394, %s22, 1
        %p396 = scmp.lt.s32.totalorder %s393, 7
        %s397 = scalar_select %p396, %s393, 7
        %s398 = smul.addr %s395, 8
        %s399 = sadd.s32 %s397, %s398
        %s400 = smul.addr %s399, 8
        %s401 = scalar_lea.vmem %s5, %s400
      $region52: #{conformer_convolution.3} parent=47 // pred_fallthru
        _
    $region48: #{conformer_convolution.3} parent=5 // pred_fallthru
      _
  $region6: #{conformer_convolution.3} parent=0 // loop_footer
    %s15 = sadd.s32 1, %s11
  $region7: #{conformer_convolution.3} parent=0 // loop_footer_branch
    %10 = sbr.rel target = $region3
  $region8: #{conformer_convolution.3} parent=0 // loop_exit
    _

// kernel: conformer_convolution.2
$region0: #{conformer_convolution.2}
  #allocation0 [shape = 'u32[]', space=smem, size = 0x4, offset = 0x4, fixed_abs, tag = 'smem constant byte address 0x4 - core index']
  #allocation1 [shape = 'u32[144,128]{1,0:T(1,128)}', space=vmem, size = 0x12000, scoped, tag = 'internal scratch']
  #allocation2 [shape = 'f32[20,32]{1,0:T(8,128)}', space=vmem, size = 0x3000, scoped, tag = 'scratch operand']
  #allocation3 [shape = 's32[1]{0}', space=sflag, size = 0x4, scoped, tag = 'scoped memory for conformer_convolution.2']
  #allocation4 [shape = 'u8[512]{0}', space=smem, size = 0x200, scoped, tag = 'prefetched SMEM operand 0']
  %s0 = inlined_call_operand.vmem [shape: s32[2], index: 0, kind: input, shape index: {}]
  %s1 = inlined_call_operand.vmem [shape: bf16[2,64,32], index: 1, kind: input, shape index: {}]
  %s2 = inlined_call_operand.vmem [shape: bf16[2,4,4,32], index: 2, kind: input, shape index: {}]
  %s3 = inlined_call_operand.vmem [shape: bf16[32,32], index: 3, kind: input, shape index: {}]
  %s4 = inlined_call_operand.vmem [shape: f32[1,32], index: 4, kind: input, shape index: {}]
  %s5 = inlined_call_operand.vmem [shape: bf16[32,32], index: 5, kind: input, shape index: {}]
  %s6 = inlined_call_operand.vmem [shape: f32[1,32], index: 6, kind: input, shape index: {}]
  %s7 = inlined_call_operand.vmem [shape: f32[5,32], index: 7, kind: input, shape index: {}]
  %s8 = inlined_call_operand.vmem [shape: bf16[2,64,32], index: 8, kind: output, shape index: {0}]
  %s9 = inlined_call_operand.vmem [shape: f32[4,1,32], index: 9, kind: output, shape index: {1}]
  %s10 = inlined_call_operand.vmem [shape: f32[4,1,32], index: 10, kind: output, shape index: {2}]
  %11 = xla_tuple %s8, %s9, %s10
  %s12 = sld [smem:[#allocation0]]
  $region81: #{conformer_convolution.2} parent=0
    _
  %s14 = ssub.s32 1, %s12
  %s15 = scalar_select 0, %s14, %s12
  %s16 = sshll.u32 %s0, 4
  %s17 = int_to_ptr.vmem [resolvable:$true] %s16
  %19 = dma.vmem_to_smem %s17, 16, [#allocation4], [#allocation3]
  %20 = dma.done [#allocation3], 16
  %21 = sfence
  loop: start=0, step=1, limit=10
  $region2: #{conformer_convolution.2} parent=0 // loop_pre_header
    _
  $region3: #{conformer_convolution.2} parent=0 // loop_header
    %s23 = sphi 0, %s27
    %p24 = scmp.ge.s32.totalorder %s23, 10
    %s30 = sphi 0, %s49
    %s31 = sphi 0, %s45
    %s32 = sphi 0, %s41
    %s33 = sphi 0, %s30
    %s34 = sphi 0, %s31
    %s35 = sphi 0, %s32
    %s36 = sphi 0, %s33
    %s37 = sphi 0, %s34
    %s38 = sphi 0, %s35
    %s58 = sphi 0, %s60
    %s61 = sphi 0, %s58
    %s62 = sphi 0, %s61
    %s78 = sphi 0, %s62
    %s90 = sphi 0, %s92
    %s93 = sphi 0, %s90
    %s94 = sphi 0, %s93
    %s110 = sphi 0, %s94
    %s114 = sphi 0, %s114
    %s116 = sphi 0, %s114
    %s117 = sphi 0, %s116
    %s131 = sphi 0, %s117
    %s135 = sphi 0, %s135
    %s137 = sphi 0, %s135
    %s138 = sphi 0, %s137
    %s152 = sphi 0, %s138
    %s156 = sphi 0, %s156
    %s158 = sphi 0, %s156
    %s159 = sphi 0, %s158
    %s173 = sphi 0, %s159
    %s177 = sphi 0, %s177
    %s179 = sphi 0, %s177
    %s180 = sphi 0, %s179
    %s194 = sphi 0, %s180
    %s198 = sphi 0, %s198
    %s200 = sphi 0, %s198
    %s201 = sphi 0, %s200
    %s215 = sphi 0, %s201
    %s227 = sphi 0, %s229
    %s230 = sphi 0, %s227
    %s231 = sphi 0, %s230
    %s247 = sphi 0, %s231
    %s257 = sphi 0, %s259
    %s260 = sphi 0, %s257
    %s261 = sphi 0, %s260
    %s277 = sphi 0, %s261
    %s287 = sphi 0, %s289
    %s290 = sphi 0, %s287
    %s291 = sphi 0, %s290
    %s307 = sphi 0, %s291
  $region4: #{conformer_convolution.2} parent=0 // loop_header_branch
    %26 = sbr.rel (%p24) target = $region8
  $region5: #{conformer_convolution.2} parent=0 // loop_body
    %s28 = ssub.s32 %s23, 1
    %s29 = ssub.s32 %s23, 2
    %s39 = sadd.s32 1, %s32
    %p40 = scmp.ge.s32.totalorder %s39, 2
    %s41 = scalar_select %p40, 0, %s39
    %s42 = sadd.s32 1, %s31
    %s43 = scalar_select %p40, %s42, %s31
    %p44 = scmp.ge.s32.totalorder %s43, 2
    %s45 = scalar_select %p44, 0, %s43
    %s46 = sadd.s32 1, %s30
    %s47 = scalar_select %p44, %s46, %s30
    %p48 = scmp.ge.s32.totalorder %s47, 2
    %s49 = scalar_select %p48, 0, %s47
    %s50 = smul.u32 %s31, 2
    %s51 = sadd.s32 %s50, %s32
    %s52 = smul.u32 %s45, 2
    %s53 = sadd.s32 %s52, %s41
    %s54 = ssub.s32 %s30, %s49
    %s55 = ssub.s32 %s51, %s53
    %s56 = sor.u32 %s54, %s55
    %p57 = scmp.eq.s32.totalorder %s56, 0
    %s59 = sadd.s32 %s58, 1
    %s60 = scalar_select %p57, %s58, %s59
    %p63 = pneg %p57
    %p64 = scmp.eq.s32.totalorder %s23, 7
    %p65 = por %p63, %p64
    %p66 = scmp.ne.s32.totalorder %s58, %s61
    %p67 = scmp.eq.s32.totalorder %s23, 0
    %p68 = por %p66, %p67
    %p69 = scmp.ne.s32.totalorder %s58, %s61
    %p70 = scmp.eq.s32.totalorder %s28, 7
    %p71 = por %p69, %p70
    %p72 = scmp.ne.s32.totalorder %s61, %s62
    %p73 = scmp.eq.s32.totalorder %s28, 0
    %p74 = por %p72, %p73
    %p75 = scmp.ne.s32.totalorder %s61, %s62
    %p76 = scmp.eq.s32.totalorder %s29, 7
    %p77 = por %p75, %p76
    %p79 = scmp.ne.s32.totalorder %s62, %s78
    %p80 = scmp.eq.s32.totalorder %s29, 0
    %p81 = por %p79, %p80
    %s82 = smul.u32 %s31, 2
    %s83 = sadd.s32 %s82, %s32
    %s84 = smul.u32 %s45, 2
    %s85 = sadd.s32 %s84, %s41
    %s86 = ssub.s32 %s30, %s49
    %s87 = ssub.s32 %s83, %s85
    %s88 = sor.u32 %s86, %s87
    %p89 = scmp.eq.s32.totalorder %s88, 0
    %s91 = sadd.s32 %s90, 1
    %s92 = scalar_select %p89, %s90, %s91
    %p95 = pneg %p89
    %p96 = scmp.eq.s32.totalorder %s23, 7
    %p97 = por %p95, %p96
    %p98 = scmp.ne.s32.totalorder %s90, %s93
    %p99 = scmp.eq.s32.totalorder %s23, 0
    %p100 = por %p98, %p99
    %p101 = scmp.ne.s32.totalorder %s90, %s93
    %p102 = scmp.eq.s32.totalorder %s28, 7
    %p103 = por %p101, %p102
    %p104 = scmp.ne.s32.totalorder %s93, %s94
    %p105 = scmp.eq.s32.totalorder %s28, 0
    %p106 = por %p104, %p105
    %p107 = scmp.ne.s32.totalorder %s93, %s94
    %p108 = scmp.eq.s32.totalorder %s29, 7
    %p109 = por %p107, %p108
    %p111 = scmp.ne.s32.totalorder %s94, %s110
    %p112 = scmp.eq.s32.totalorder %s29, 0
    %p113 = por %p111, %p112
    %s115 = sadd.s32 %s114, 1
    %p118 = scmp.eq.s32.totalorder %s23, 7
    %p119 = scmp.ne.s32.totalorder %s114, %s116
    %p120 = scmp.eq.s32.totalorder %s23, 0
    %p121 = por %p119, %p120
    %p122 = scmp.ne.s32.totalorder %s114, %s116
    %p123 = scmp.eq.s32.totalorder %s28, 7
    %p124 = por %p122, %p123
    %p125 = scmp.ne.s32.totalorder %s116, %s117
    %p126 = scmp.eq.s32.totalorder %s28, 0
    %p127 = por %p125, %p126
    %p128 = scmp.ne.s32.totalorder %s116, %s117
    %p129 = scmp.eq.s32.totalorder %s29, 7
    %p130 = por %p128, %p129
    %p132 = scmp.ne.s32.totalorder %s117, %s131
    %p133 = scmp.eq.s32.totalorder %s29, 0
    %p134 = por %p132, %p133
    %s136 = sadd.s32 %s135, 1
    %p139 = scmp.eq.s32.totalorder %s23, 7
    %p140 = scmp.ne.s32.totalorder %s135, %s137
    %p141 = scmp.eq.s32.totalorder %s23, 0
    %p142 = por %p140, %p141
    %p143 = scmp.ne.s32.totalorder %s135, %s137
    %p144 = scmp.eq.s32.totalorder %s28, 7
    %p145 = por %p143, %p144
    %p146 = scmp.ne.s32.totalorder %s137, %s138
    %p147 = scmp.eq.s32.totalorder %s28, 0
    %p148 = por %p146, %p147
    %p149 = scmp.ne.s32.totalorder %s137, %s138
    %p150 = scmp.eq.s32.totalorder %s29, 7
    %p151 = por %p149, %p150
    %p153 = scmp.ne.s32.totalorder %s138, %s152
    %p154 = scmp.eq.s32.totalorder %s29, 0
    %p155 = por %p153, %p154
    %s157 = sadd.s32 %s156, 1
    %p160 = scmp.eq.s32.totalorder %s23, 7
    %p161 = scmp.ne.s32.totalorder %s156, %s158
    %p162 = scmp.eq.s32.totalorder %s23, 0
    %p163 = por %p161, %p162
    %p164 = scmp.ne.s32.totalorder %s156, %s158
    %p165 = scmp.eq.s32.totalorder %s28, 7
    %p166 = por %p164, %p165
    %p167 = scmp.ne.s32.totalorder %s158, %s159
    %p168 = scmp.eq.s32.totalorder %s28, 0
    %p169 = por %p167, %p168
    %p170 = scmp.ne.s32.totalorder %s158, %s159
    %p171 = scmp.eq.s32.totalorder %s29, 7
    %p172 = por %p170, %p171
    %p174 = scmp.ne.s32.totalorder %s159, %s173
    %p175 = scmp.eq.s32.totalorder %s29, 0
    %p176 = por %p174, %p175
    %s178 = sadd.s32 %s177, 1
    %p181 = scmp.eq.s32.totalorder %s23, 7
    %p182 = scmp.ne.s32.totalorder %s177, %s179
    %p183 = scmp.eq.s32.totalorder %s23, 0
    %p184 = por %p182, %p183
    %p185 = scmp.ne.s32.totalorder %s177, %s179
    %p186 = scmp.eq.s32.totalorder %s28, 7
    %p187 = por %p185, %p186
    %p188 = scmp.ne.s32.totalorder %s179, %s180
    %p189 = scmp.eq.s32.totalorder %s28, 0
    %p190 = por %p188, %p189
    %p191 = scmp.ne.s32.totalorder %s179, %s180
    %p192 = scmp.eq.s32.totalorder %s29, 7
    %p193 = por %p191, %p192
    %p195 = scmp.ne.s32.totalorder %s180, %s194
    %p196 = scmp.eq.s32.totalorder %s29, 0
    %p197 = por %p195, %p196
    %s199 = sadd.s32 %s198, 1
    %p202 = scmp.eq.s32.totalorder %s23, 7
    %p203 = scmp.ne.s32.totalorder %s198, %s200
    %p204 = scmp.eq.s32.totalorder %s23, 0
    %p205 = por %p203, %p204
    %p206 = scmp.ne.s32.totalorder %s198, %s200
    %p207 = scmp.eq.s32.totalorder %s28, 7
    %p208 = por %p206, %p207
    %p209 = scmp.ne.s32.totalorder %s200, %s201
    %p210 = scmp.eq.s32.totalorder %s28, 0
    %p211 = por %p209, %p210
    %p212 = scmp.ne.s32.totalorder %s200, %s201
    %p213 = scmp.eq.s32.totalorder %s29, 7
    %p214 = por %p212, %p213
    %p216 = scmp.ne.s32.totalorder %s201, %s215
    %p217 = scmp.eq.s32.totalorder %s29, 0
    %p218 = por %p216, %p217
    %s219 = smul.u32 %s31, 2
    %s220 = sadd.s32 %s219, %s32
    %s221 = smul.u32 %s45, 2
    %s222 = sadd.s32 %s221, %s41
    %s223 = ssub.s32 %s30, %s49
    %s224 = ssub.s32 %s220, %s222
    %s225 = sor.u32 %s223, %s224
    %p226 = scmp.eq.s32.totalorder %s225, 0
    %s228 = sadd.s32 %s227, 1
    %s229 = scalar_select %p226, %s227, %s228
    %p232 = pneg %p226
    %p233 = scmp.eq.s32.totalorder %s23, 7
    %p234 = por %p232, %p233
    %p235 = scmp.ne.s32.totalorder %s227, %s230
    %p236 = scmp.eq.s32.totalorder %s23, 0
    %p237 = por %p235, %p236
    %p238 = scmp.ne.s32.totalorder %s227, %s230
    %p239 = scmp.eq.s32.totalorder %s28, 7
    %p240 = por %p238, %p239
    %p241 = scmp.ne.s32.totalorder %s230, %s231
    %p242 = scmp.eq.s32.totalorder %s28, 0
    %p243 = por %p241, %p242
    %p244 = scmp.ne.s32.totalorder %s230, %s231
    %p245 = scmp.eq.s32.totalorder %s29, 7
    %p246 = por %p244, %p245
    %p248 = scmp.ne.s32.totalorder %s231, %s247
    %p249 = scmp.eq.s32.totalorder %s29, 0
    %p250 = por %p248, %p249
    %s251 = smul.u32 %s30, 2
    %s252 = sadd.s32 %s251, %s31
    %s253 = smul.u32 %s49, 2
    %s254 = sadd.s32 %s253, %s45
    %s255 = ssub.s32 %s252, %s254
    %p256 = scmp.eq.s32.totalorder %s255, 0
    %s258 = sadd.s32 %s257, 1
    %s259 = scalar_select %p256, %s257, %s258
    %p262 = pneg %p256
    %p263 = scmp.eq.s32.totalorder %s23, 7
    %p264 = por %p262, %p263
    %p265 = scmp.ne.s32.totalorder %s257, %s260
    %p266 = scmp.eq.s32.totalorder %s23, 0
    %p267 = por %p265, %p266
    %p268 = scmp.ne.s32.totalorder %s257, %s260
    %p269 = scmp.eq.s32.totalorder %s28, 7
    %p270 = por %p268, %p269
    %p271 = scmp.ne.s32.totalorder %s260, %s261
    %p272 = scmp.eq.s32.totalorder %s28, 0
    %p273 = por %p271, %p272
    %p274 = scmp.ne.s32.totalorder %s260, %s261
    %p275 = scmp.eq.s32.totalorder %s29, 7
    %p276 = por %p274, %p275
    %p278 = scmp.ne.s32.totalorder %s261, %s277
    %p279 = scmp.eq.s32.totalorder %s29, 0
    %p280 = por %p278, %p279
    %s281 = smul.u32 %s30, 2
    %s282 = sadd.s32 %s281, %s31
    %s283 = smul.u32 %s49, 2
    %s284 = sadd.s32 %s283, %s45
    %s285 = ssub.s32 %s282, %s284
    %p286 = scmp.eq.s32.totalorder %s285, 0
    %s288 = sadd.s32 %s287, 1
    %s289 = scalar_select %p286, %s287, %s288
    %p292 = pneg %p286
    %p293 = scmp.eq.s32.totalorder %s23, 7
    %p294 = por %p292, %p293
    %p295 = scmp.ne.s32.totalorder %s287, %s290
    %p296 = scmp.eq.s32.totalorder %s23, 0
    %p297 = por %p295, %p296
    %p298 = scmp.ne.s32.totalorder %s287, %s290
    %p299 = scmp.eq.s32.totalorder %s28, 7
    %p300 = por %p298, %p299
    %p301 = scmp.ne.s32.totalorder %s290, %s291
    %p302 = scmp.eq.s32.totalorder %s28, 0
    %p303 = por %p301, %p302
    %p304 = scmp.ne.s32.totalorder %s290, %s291
    %p305 = scmp.eq.s32.totalorder %s29, 7
    %p306 = por %p304, %p305
    %p308 = scmp.ne.s32.totalorder %s291, %s307
    %p309 = scmp.eq.s32.totalorder %s29, 0
    %p310 = por %p308, %p309
    %p311 = scmp.le.s32.totalorder 1, %s23
    %p312 = scmp.lt.s32.totalorder %s23, 9
    %p313 = pnand %p311, %p312
    %p314 = pneg %p313
    // Predicated region
    $region9: #{conformer_convolution.2} parent=5 // pred_check
      _
    $region10: #{conformer_convolution.2} parent=5 // pred_check_branch
      %316 = sbr.rel (%p313) target = $region12
    $region11: #{conformer_convolution.2} parent=5 // pred_region
      %s317 = ssub.s32 %s23, 1
      // Predicated region
      $region13: #{conformer_convolution.2} parent=11 // pred_check
        %p318 = pneg %p127
      $region14: #{conformer_convolution.2} parent=11 // pred_check_branch
        %320 = sbr.rel (%p318) target = $region16
      $region15: #{conformer_convolution.2} parent=11 // pred_region
        _
      $region16: #{conformer_convolution.2} parent=11 // pred_fallthru
        _
      // Predicated region
      $region17: #{conformer_convolution.2} parent=11 // pred_check
        %p321 = pneg %p148
      $region18: #{conformer_convolution.2} parent=11 // pred_check_branch
        %323 = sbr.rel (%p321) target = $region20
      $region19: #{conformer_convolution.2} parent=11 // pred_region
        _
      $region20: #{conformer_convolution.2} parent=11 // pred_fallthru
        _
      // Predicated region
      $region21: #{conformer_convolution.2} parent=11 // pred_check
        %p324 = pneg %p169
      $region22: #{conformer_convolution.2} parent=11 // pred_check_branch
        %326 = sbr.rel (%p324) target = $region24
      $region23: #{conformer_convolution.2} parent=11 // pred_region
        _
      $region24: #{conformer_convolution.2} parent=11 // pred_fallthru
        _
      // Predicated region
      $region25: #{conformer_convolution.2} parent=11 // pred_check
        %p327 = pneg %p190
      $region26: #{conformer_convolution.2} parent=11 // pred_check_branch
        %329 = sbr.rel (%p327) target = $region28
      $region27: #{conformer_convolution.2} parent=11 // pred_region
        _
      $region28: #{conformer_convolution.2} parent=11 // pred_fallthru
        _
      // Predicated region
      $region29: #{conformer_convolution.2} parent=11 // pred_check
        %p330 = pneg %p211
      $region30: #{conformer_convolution.2} parent=11 // pred_check_branch
        %332 = sbr.rel (%p330) target = $region32
      $region31: #{conformer_convolution.2} parent=11 // pred_region
        _
      $region32: #{conformer_convolution.2} parent=11 // pred_fallthru
        _
    $region12: #{conformer_convolution.2} parent=5 // pred_fallthru
      _
    %p333 = scmp.lt.s32.totalorder %s23, 8
    // Predicated region
    $region33: #{conformer_convolution.2} parent=5 // pred_check
      %p334 = pneg %p333
    $region34: #{conformer_convolution.2} parent=5 // pred_check_branch
      %336 = sbr.rel (%p334) target = $region36
    $region35: #{conformer_convolution.2} parent=5 // pred_region
      // Predicated region
      $region37: #{conformer_convolution.2} parent=35 // pred_check
        %p337 = pneg %p68
      $region38: #{conformer_convolution.2} parent=35 // pred_check_branch
        %339 = sbr.rel (%p337) target = $region40
      $region39: #{conformer_convolution.2} parent=35 // pred_region
        %s340 = smul.u32 %s31, 2
        %s341 = sadd.s32 %s340, %s32
        %s342 = smul.u32 2, %s341
        %p343 = scmp.lt.s32.totalorder %s30, 1
        %s344 = scalar_select %p343, %s30, 1
        %p345 = scmp.lt.s32.totalorder %s342, 7
        %s346 = scalar_select %p345, %s342, 7
        %s347 = smul.addr %s344, 8
        %s348 = sadd.s32 %s346, %s347
        %s349 = smul.addr %s348, 4
        %s350 = scalar_lea.vmem %s1, %s349
        %s351 = smul.u32 %s31, 2
        %s352 = sadd.s32 %s351, %s32
        %s353 = smul.u32 2, %s352
      $region40: #{conformer_convolution.2} parent=35 // pred_fallthru
        _
      // Predicated region
      $region41: #{conformer_convolution.2} parent=35 // pred_check
        %p354 = pneg %p100
      $region42: #{conformer_convolution.2} parent=35 // pred_check_branch
        %356 = sbr.rel (%p354) target = $region44
      $region43: #{conformer_convolution.2} parent=35 // pred_region
        %s357 = smul.u32 %s31, 2
        %s358 = sadd.s32 %s357, %s32
        %p359 = scmp.lt.s32.totalorder %s30, 1
        %s360 = scalar_select %p359, %s30, 1
        %p361 = scmp.lt.s32.totalorder %s358, 3
        %s362 = scalar_select %p361, %s358, 3
        %s363 = smul.addr %s360, 4
        %s364 = sadd.s32 %s362, %s363
        %s365 = smul.addr %s364, 2
        %s366 = scalar_lea.vmem %s2, %s365
        %s367 = smul.u32 %s31, 2
        %s368 = sadd.s32 %s367, %s32
      $region44: #{conformer_convolution.2} parent=35 // pred_fallthru
        _
    $region36: #{conformer_convolution.2} parent=5 // pred_fallthru
      _
    %p369 = scmp.le.s32.totalorder 1, %s23
    %p370 = scmp.lt.s32.totalorder %s23, 9
    %p371 = pnand %p369, %p370
    %p372 = pneg %p371
    // Predicated region
    $region45: #{conformer_convolution.2} parent=5 // pred_check
      _
    $region46: #{conformer_convolution.2} parent=5 // pred_check_branch
      %374 = sbr.rel (%p371) target = $region48
    $region47: #{conformer_convolution.2} parent=5 // pred_region
      %s375 = ssub.s32 %s23, 1
      %s376 = smul.u32 %s34, 2
      %s377 = sadd.s32 %s376, %s35
      %s378 = smul.u32 2, %s377
      %p379 = scmp.lt.s32.totalorder %s33, 1
      %s380 = scalar_select %p379, %s33, 1
      %p381 = scmp.lt.s32.totalorder %s378, 7
      %s382 = scalar_select %p381, %s378, 7
      %s383 = smul.addr %s380, 8
      %s384 = sadd.s32 %s382, %s383
      %s385 = smul.addr %s384, 4
      %s386 = scalar_lea.vmem %s1, %s385
      %p387 = pneg %p74
      %p388 = pneg %p71
      %s389 = smul.u32 %s34, 2
      %s390 = sadd.s32 %s389, %s35
      %p391 = scmp.lt.s32.totalorder %s33, 1
      %s392 = scalar_select %p391, %s33, 1
      %p393 = scmp.lt.s32.totalorder %s390, 3
      %s394 = scalar_select %p393, %s390, 3
      %s395 = smul.addr %s392, 4
      %s396 = sadd.s32 %s394, %s395
      %s397 = smul.addr %s396, 2
      %s398 = scalar_lea.vmem %s2, %s397
      %p399 = pneg %p106
      %p400 = pneg %p103
      %p401 = pneg %p127
      %p402 = pneg %p124
      %p403 = pneg %p148
      %p404 = pneg %p145
      %p405 = pneg %p169
      %p406 = pneg %p166
      %p407 = pneg %p190
      %p408 = pneg %p187
      %p409 = pneg %p211
      %p410 = pneg %p208
      %p411 = pneg %p243
      %p412 = pneg %p240
      %s413 = smul.u32 %s34, 2
      %s414 = sadd.s32 %s413, %s35
      %s415 = smul.u32 2, %s414
      %p416 = scmp.lt.s32.totalorder %s33, 1
      %s417 = scalar_select %p416, %s33, 1
      %p418 = scmp.lt.s32.totalorder %s415, 7
      %s419 = scalar_select %p418, %s415, 7
      %s420 = smul.addr %s417, 8
      %s421 = sadd.s32 %s419, %s420
      %s422 = smul.addr %s421, 4
      %s423 = scalar_lea.vmem %s8, %s422
      %p424 = pneg %p273
      %p425 = pneg %p270
      %s426 = smul.u32 %s33, 2
      %s427 = sadd.s32 %s426, %s34
      %p428 = scmp.lt.s32.totalorder %s427, 3
      %s429 = scalar_select %p428, %s427, 3
      %s430 = scalar_lea.vmem %s9, %s429
      %p431 = pneg %p303
      %p432 = pneg %p300
      %s433 = smul.u32 %s33, 2
      %s434 = sadd.s32 %s433, %s34
      %p435 = scmp.lt.s32.totalorder %s434, 3
      %s436 = scalar_select %p435, %s434, 3
      %s437 = scalar_lea.vmem %s10, %s436
      %s438 = smul.u32 %s34, 2
      %s439 = sadd.s32 %s438, %s35
      %s440 = smul.u32 2, %s439
      %p441 = scmp.lt.s32.totalorder %s33, 1
      %s442 = scalar_select %p441, %s33, 1
      %p443 = scmp.lt.s32.totalorder %s440, 7
      %s444 = scalar_select %p443, %s440, 7
      %s445 = smul.addr %s442, 8
      %s446 = sadd.s32 %s444, %s445
      %s447 = smul.addr %s446, 4
      %s448 = scalar_lea.vmem %s1, %s447
      %s449 = smul.u32 %s34, 2
      %s450 = sadd.s32 %s449, %s35
      %s451 = smul.u32 2, %s450
      %s452 = smul.u32 %s34, 2
      %s453 = sadd.s32 %s452, %s35
      %p454 = scmp.lt.s32.totalorder %s33, 1
      %s455 = scalar_select %p454, %s33, 1
      %p456 = scmp.lt.s32.totalorder %s453, 3
      %s457 = scalar_select %p456, %s453, 3
      %s458 = smul.addr %s455, 4
      %s459 = sadd.s32 %s457, %s458
      %s460 = smul.addr %s459, 2
      %s461 = scalar_lea.vmem %s2, %s460
      %s462 = smul.u32 %s34, 2
      %s463 = sadd.s32 %s462, %s35
      %s464 = smul.u32 %s34, 2
      %s465 = sadd.s32 %s464, %s35
      %s466 = smul.u32 2, %s465
      %p467 = scmp.lt.s32.totalorder %s33, 1
      %s468 = scalar_select %p467, %s33, 1
      %p469 = scmp.lt.s32.totalorder %s466, 7
      %s470 = scalar_select %p469, %s466, 7
      %s471 = smul.addr %s468, 8
      %s472 = sadd.s32 %s470, %s471
      %s473 = smul.addr %s472, 4
      %s474 = scalar_lea.vmem %s8, %s473
      %s475 = smul.u32 %s34, 2
      %s476 = sadd.s32 %s475, %s35
      %s477 = smul.u32 2, %s476
      %s478 = smul.u32 %s33, 2
      %s479 = sadd.s32 %s478, %s34
      %p480 = scmp.lt.s32.totalorder %s479, 3
      %s481 = scalar_select %p480, %s479, 3
      %s482 = scalar_lea.vmem %s9, %s481
      %s483 = smul.u32 %s33, 2
      %s484 = sadd.s32 %s483, %s34
      %s485 = smul.u32 %s33, 2
      %s486 = sadd.s32 %s485, %s34
      %p487 = scmp.lt.s32.totalorder %s486, 3
      %s488 = scalar_select %p487, %s486, 3
      %s489 = scalar_lea.vmem %s10, %s488
      %s490 = smul.u32 %s33, 2
      %s491 = sadd.s32 %s490, %s34
      %s493 = smul.u32 %s34, 2
      %s494 = sadd.s32 %s493, %s35
      %s495 = smul.u32 %s494, 16
      %s496 = sld [smem:[#allocation4 + %s33]]
      %v497 = vlaneseq
      %v498 = vshrl.u32 %v497, 7
      %v499 = vadd.s32 %v498, 8
      %v500 = vstv %s495
      %v501 = vadd.s32 %v498, %v500
      %v502 = vadd.s32 %v499, %v500
      %v503 = vstv %s496
      %vm504 = vcmp.lt.s32.totalorder %v501, %v503
      %vm505 = vcmp.lt.s32.totalorder %v502, %v503
      %v506 = vsel %vm504, 1, 0
      %v507 = vsel %vm505, 1, 0
      %v508 = vcvt.s32.f32 %v506
      %v509 = vcvt.s32.f32 %v507
      %vm510 = vcmp.lt.s32.totalorder %v501, 40
      %vm511 = vcmp.lt.s32.totalorder %v502, 40
      %v512 = vsel %vm510, 1, 0
      %v513 = vsel %vm511, 1, 0
      %v514 = vcvt.s32.f32 %v512
      %v515 = vcvt.s32.f32 %v513
      %v516 = vld [vmem:[%s448] sm:$0xf]
      %v517 = vld [vmem:[%s448 + $0x4] sm:$0xf]
      %v518 = vld [vmem:[%s461] sm:$0x3]
      %vm519 = vcmp.lt.s32.totalorder %v498, 2
      %s520 = ssub.s32 %s495, 2
      %v521 = vstv %s520
      %v522 = vadd.s32 %v521, %v498
      %s523 = sadd.s32 %s495, 16
      %v524 = vstv %s523
      %v525 = vadd.s32 %v524, %v498
      %v526 = vsub.s32 %v525, 2
      %v527 = vsel %vm519, %v522, %v526
      %vm528 = vcmp.ge.s32.totalorder %v527, 0
      %vm529 = vcmp.lt.s32.totalorder %v527, %v503
      %vm530 = vmand %vm528, %vm529
      %v531 = vsel %vm530, 1, 0
      %v532 = vcvt.s32.f32 %v531
      %v535 = vunpack.c.l.b16 %v516
      %v536 = vunpack.c.l.b16 %v517
      %v537 = vpack.c.b16 %v536, %v535
      %v538 = vrot.slane %v537, 7
      %vm539 = vcmask 1040384
      %v542 = vsel %vm539, %v518, %v538
      %v543 = vsel %vm539, %v538, %v518
      %vm546 = vcmask 1041408
      %v547 = vrot.slane %v508, 6
      %v548 = vrot.slane %v509, 6
      %v549 = vsel %vm546, %v547, %v548
      %v552 = vsel %vm546, %v532, %v547
      %v553 = vsel %vm546, %v548, %v532
      %v554 = vld [vmem:[%s3] sm:$0xf]
      %v555 = vld [vmem:[%s3 + $0x4] sm:$0xf]
      %v556 = vld [vmem:[%s3 + $0x8] sm:$0xf]
      %v557 = vld [vmem:[%s3 + $0xc] sm:$0xf]
      %v558 = vld [vmem:[%s4] sm:$0x1]
      %v560 = vlaneseq
      %v561 = vshrl.u32 %v560, 7
      %v562 = vsub.s32 0, %v561
      %v563 = vrot.slane %v558, %v562
      %v569 = vunpack.c.l.b16 %v554
      %v570 = vunpack.c.l.b16 %v555
      %v571 = vunpack.c.l.b16 %v556
      %v572 = vunpack.c.l.b16 %v557
      %v573 = vpack.c.b16 %v570, %v569
      %v574 = vpack.c.b16 %v572, %v571
      %vm577 = vcmask 261120
      %v578 = vsel %vm577, %v542, 0
      %v580 = vsel %vm577, %v543, 0
      %582 = vmatprep.subr.bf16.mxu0 0
      %583 = vmatpush1.bf16.msra.mxu0 %v573
      %584 = vmatprep.subr.bf16.mxu0 0
      %585 = vmatpush1.bf16.msra.mxu0 %v574
      %586 = vmatprep.subr.bf16.mxu0 0
      %587 = vmatpush1.bf16.msra.mxu0 0
      %588 = vmatprep.subr.bf16.mxu0 0
      %589 = vmatpush1.bf16.msra.mxu0 0
      %590 = vmatprep.subr.bf16.mxu0 0
      %591 = vmatpush1.bf16.msra.mxu0 0
      %592 = vmatprep.subr.bf16.mxu0 0
      %593 = vmatpush1.bf16.msra.mxu0 0
      %594 = vmatprep.subr.bf16.mxu0 0
      %595 = vmatpush1.bf16.msra.mxu0 0
      %596 = vmatprep.subr.bf16.mxu0 0
      %597 = vmatpush1.bf16.msra.mxu0 0
      %598 = vmatprep.subr.bf16.mxu0 0
      %599 = vmatpush1.bf16.msra.mxu0 0
      %600 = vmatprep.subr.bf16.mxu0 0
      %601 = vmatpush1.bf16.msra.mxu0 0
      %602 = vmatprep.subr.bf16.mxu0 0
      %603 = vmatpush1.bf16.msra.mxu0 0
      %604 = vmatprep.subr.bf16.mxu0 0
      %605 = vmatpush1.bf16.msra.mxu0 0
      %606 = vmatprep.subr.bf16.mxu0 0
      %607 = vmatpush1.bf16.msra.mxu0 0
      %608 = vmatprep.subr.bf16.mxu0 0
      %609 = vmatpush1.bf16.msra.mxu0 0
      %610 = vmatprep.subr.bf16.mxu0 0
      %611 = vmatpush1.bf16.msra.mxu0 0
      %612 = vmatprep.subr.bf16.mxu0 0
      %613 = vmatpush1.bf16.msra.mxu0 0
      %614 = vmatprep.mubr.bf16.mxu0 0
      %615 = vmatmul.mubr.bf16.gmra.mrb[0].mxu0 %v578
      %v616 = vpop.f32.mrb[0].mxu0
      %v617 = vadd.f32 %v563, %v616
      %v618 = vpop.f32.mrb[0].mxu0
      %v619 = vpop.f32.mrb[0].mxu0
      %v620 = vadd.f32 %v563, %v619
      %v621 = vpop.f32.mrb[0].mxu0
      %622 = vmatprep.mubr.bf16.mxu0 0
      %623 = vmatmul.mubr.bf16.gmra.mrb[0].mxu0 %v580
      %v624 = vpop.f32.mrb[0].mxu0
      %v625 = vadd.f32 %v563, %v624
      %v626 = vpop.f32.mrb[0].mxu0
      %v627 = vpop.f32.mrb[0].mxu0
      %v628 = vpop.f32.mrb[0].mxu0
      %629 = vdwg.mxu0
      %v630 = vld [vmem:[%s5] sm:$0xf]
      %v631 = vld [vmem:[%s5 + $0x4] sm:$0xf]
      %v632 = vld [vmem:[%s5 + $0x8] sm:$0xf]
      %v633 = vld [vmem:[%s5 + $0xc] sm:$0xf]
      %v634 = vld [vmem:[%s6] sm:$0x1]
      %v636 = vlaneseq
      %v637 = vshrl.u32 %v636, 7
      %v638 = vsub.s32 0, %v637
      %v639 = vrot.slane %v634, %v638
      %v645 = vunpack.c.l.b16 %v630
      %v646 = vunpack.c.l.b16 %v631
      %v647 = vunpack.c.l.b16 %v632
      %v648 = vunpack.c.l.b16 %v633
      %v649 = vpack.c.b16 %v646, %v645
      %v650 = vpack.c.b16 %v648, %v647
      %653 = vmatprep.subr.bf16.mxu0 0
      %654 = vmatpush1.bf16.msra.mxu0 %v649
      %655 = vmatprep.subr.bf16.mxu0 0
      %656 = vmatpush1.bf16.msra.mxu0 %v650
      %657 = vmatprep.subr.bf16.mxu0 0
      %658 = vmatpush1.bf16.msra.mxu0 0
      %659 = vmatprep.subr.bf16.mxu0 0
      %660 = vmatpush1.bf16.msra.mxu0 0
      %661 = vmatprep.subr.bf16.mxu0 0
      %662 = vmatpush1.bf16.msra.mxu0 0
      %663 = vmatprep.subr.bf16.mxu0 0
      %664 = vmatpush1.bf16.msra.mxu0 0
      %665 = vmatprep.subr.bf16.mxu0 0
      %666 = vmatpush1.bf16.msra.mxu0 0
      %667 = vmatprep.subr.bf16.mxu0 0
      %668 = vmatpush1.bf16.msra.mxu0 0
      %669 = vmatprep.subr.bf16.mxu0 0
      %670 = vmatpush1.bf16.msra.mxu0 0
      %671 = vmatprep.subr.bf16.mxu0 0
      %672 = vmatpush1.bf16.msra.mxu0 0
      %673 = vmatprep.subr.bf16.mxu0 0
      %674 = vmatpush1.bf16.msra.mxu0 0
      %675 = vmatprep.subr.bf16.mxu0 0
      %676 = vmatpush1.bf16.msra.mxu0 0
      %677 = vmatprep.subr.bf16.mxu0 0
      %678 = vmatpush1.bf16.msra.mxu0 0
      %679 = vmatprep.subr.bf16.mxu0 0
      %680 = vmatpush1.bf16.msra.mxu0 0
      %681 = vmatprep.subr.bf16.mxu0 0
      %682 = vmatpush1.bf16.msra.mxu0 0
      %683 = vmatprep.subr.bf16.mxu0 0
      %684 = vmatpush1.bf16.msra.mxu0 0
      %685 = vmatprep.mubr.bf16.mxu0 0
      %686 = vmatmul.mubr.bf16.gmra.mrb[0].mxu0 %v578
      %v687 = vpop.f32.mrb[0].mxu0
      %v688 = vadd.f32 %v639, %v687
      %v689 = vpop.f32.mrb[0].mxu0
      %v690 = vpop.f32.mrb[0].mxu0
      %v691 = vadd.f32 %v639, %v690
      %v692 = vpop.f32.mrb[0].mxu0
      %693 = vmatprep.mubr.bf16.mxu0 0
      %694 = vmatmul.mubr.bf16.gmra.mrb[0].mxu0 %v580
      %v695 = vpop.f32.mrb[0].mxu0
      %v696 = vadd.f32 %v639, %v695
      %v697 = vpop.f32.mrb[0].mxu0
      %v698 = vpop.f32.mrb[0].mxu0
      %v699 = vpop.f32.mrb[0].mxu0
      %700 = vdwg.mxu0
      %v701 = vxor.u32 %v688, 2147483648
      %v702 = vxor.u32 %v691, 2147483648
      %v703 = vxor.u32 %v696, 2147483648
      %v704 = vmul.f32 %v701, 1.442695
      %v705 = vpow.pop %v704
      %v706 = vmul.f32 %v702, 1.442695
      %v707 = vpow.pop %v706
      %v708 = vmul.f32 %v703, 1.442695
      %v709 = vpow.pop %v708
      %v710 = vadd.f32 %v705, 1.0
      %v711 = vadd.f32 %v707, 1.0
      %v712 = vadd.f32 %v709, 1.0
      %v713 = vrcp.pop %v710
      %v714 = vmul.f32 1.0, %v713
      %v715 = vrcp.pop %v711
      %v716 = vmul.f32 1.0, %v715
      %v717 = vrcp.pop %v712
      %v718 = vmul.f32 1.0, %v717
      %v719 = vmul.f32 %v617, %v714
      %v720 = vmul.f32 %v620, %v716
      %v721 = vmul.f32 %v625, %v718
      %723 = vset.pattern.permute.xlu0 0
      %724 = vperm.xlu0 %723, %v552
      %v725 = vpop.permute.xlu0 %724
      %727 = vset.pattern.permute.xlu0 0
      %728 = vperm.xlu0 %727, %v549
      %v729 = vpop.permute.xlu0 %728
      %732 = vset.pattern.permute.xlu0 0
      %733 = vperm.xlu0 %732, %v553
      %v734 = vpop.permute.xlu0 %733
      %v736 = vmul.f32 %v719, %v725
      %v737 = vmul.f32 %v720, %v729
      %v738 = vmul.f32 %v721, %v734
      %739 = vst.msk [vmem:[#allocation2] sm:$0xff] %vm577, %v736
      %740 = vst.msk [vmem:[#allocation2 + $0x8] sm:$0xff] %vm577, %v737
      %vm741 = vcmask 257024
      %742 = vst.msk [vmem:[#allocation2 + $0x10] sm:$0xf] %vm741, %v738
      %v743 = vld [vmem:[%s7] sm:$0x1f]
      %v744 = vld [vmem:[#allocation2] sm:$0xff]
      %v745 = vld [vmem:[#allocation2 + $0x8] sm:$0xff]
      %v746 = vlaneseq
      %v747 = vshrl.u32 %v746, 7
      %v748 = vsub.s32 0, %v747
      %v749 = vrot.slane %v743, %v748
      %v750 = vmul.f32 %v744, %v749
      %v751 = vmul.f32 %v745, %v749
      %v752 = vadd.f32 %v750, 0.0
      %v753 = vadd.f32 %v751, 0.0
      %v754 = vld [vmem:[#allocation2 + $0x1] sm:$0xff]
      %v755 = vld [vmem:[#allocation2 + $0x9] sm:$0xff]
      %v756 = vlaneseq
      %v757 = vshrl.u32 %v756, 7
      %v758 = vsub.s32 1, %v757
      %v759 = vrot.slane %v743, %v758
      %v760 = vmul.f32 %v754, %v759
      %v761 = vmul.f32 %v755, %v759
      %v762 = vadd.f32 %v752, %v760
      %v763 = vadd.f32 %v753, %v761
      %v764 = vld [vmem:[#allocation2 + $0x2] sm:$0xff]
      %v765 = vld [vmem:[#allocation2 + $0xa] sm:$0xff]
      %v766 = vlaneseq
      %v767 = vshrl.u32 %v766, 7
      %v768 = vsub.s32 2, %v767
      %v769 = vrot.slane %v743, %v768
      %v770 = vmul.f32 %v764, %v769
      %v771 = vmul.f32 %v765, %v769
      %v772 = vadd.f32 %v762, %v770
      %v773 = vadd.f32 %v763, %v771
      %v774 = vld [vmem:[#allocation2 + $0x3] sm:$0xff]
      %v775 = vld [vmem:[#allocation2 + $0xb] sm:$0xff]
      %v776 = vlaneseq
      %v777 = vshrl.u32 %v776, 7
      %v778 = vsub.s32 3, %v777
      %v779 = vrot.slane %v743, %v778
      %v780 = vmul.f32 %v774, %v779
      %v781 = vmul.f32 %v775, %v779
      %v782 = vadd.f32 %v772, %v780
      %v783 = vadd.f32 %v773, %v781
      %v784 = vld [vmem:[#allocation2 + $0x4] sm:$0xff]
      %v785 = vld [vmem:[#allocation2 + $0xc] sm:$0xff]
      %v786 = vlaneseq
      %v787 = vshrl.u32 %v786, 7
      %v788 = vsub.s32 4, %v787
      %v789 = vrot.slane %v743, %v788
      %v790 = vmul.f32 %v784, %v789
      %v791 = vmul.f32 %v785, %v789
      %v792 = vadd.f32 %v782, %v790
      %v793 = vadd.f32 %v783, %v791
      %v794 = vmul.f32 %v792, %v514
      %v795 = vmul.f32 %v793, %v515
      %p796 = scmp.eq.s32.totalorder %s35, 0
      // Predicated region
      $region49: #{conformer_convolution.2} parent=47 // pred_check
        %p797 = pneg %p796
      $region50: #{conformer_convolution.2} parent=47 // pred_check_branch
        %799 = sbr.rel (%p797) target = $region52
      $region51: #{conformer_convolution.2} parent=47 // pred_region
        %vm800 = vcmask 253952
        %801 = vst.msk [vmem:[%s482] sm:$0x1] %vm800, 0.0
        %802 = vst.msk [vmem:[%s489] sm:$0x1] %vm800, 0.0
      $region52: #{conformer_convolution.2} parent=47 // pred_fallthru
        _
      %v803 = vld [vmem:[%s482] sm:$0x1]
      %v804 = vsel %vm577, %v794, 0.0
      %v805 = vsel %vm577, %v795, 0.0
      %v806 = vadd.f32 %v804, %v805
      %v807 = vrot.slane %v806, 4
      %v808 = vadd.f32 %v806, %v807
      %v809 = vrot.slane %v808, 2
      %v810 = vadd.f32 %v808, %v809
      %v811 = vrot.slane %v810, 1
      %v812 = vadd.f32 %v810, %v811
      %v813 = vadd.f32 %v803, %v812
      %vm814 = vcmask 253952
      %815 = vst.msk [vmem:[%s482] sm:$0x1] %vm814, %v813
      %v816 = vld [vmem:[%s489] sm:$0x1]
      %v817 = vmul.f32 %v794, %v792
      %v818 = vmul.f32 %v795, %v793
      %v819 = vsel %vm577, %v817, 0.0
      %v820 = vsel %vm577, %v818, 0.0
      %v821 = vadd.f32 %v819, %v820
      %v822 = vrot.slane %v821, 4
      %v823 = vadd.f32 %v821, %v822
      %v824 = vrot.slane %v823, 2
      %v825 = vadd.f32 %v823, %v824
      %v826 = vrot.slane %v825, 1
      %v827 = vadd.f32 %v825, %v826
      %v828 = vadd.f32 %v816, %v827
      %829 = vst.msk [vmem:[%s489] sm:$0x1] %vm814, %v828
      %v830 = vpack.c.bf16 %v793, %v792
      %v832 = vunpack.c.l.b16 %v830
      %v833 = vunpack.c.h.b16 %v830
      %v834 = vpack.c.b16 %v832, %v832
      %v835 = vpack.c.b16 %v833, %v833
      %838 = vst.msk [vmem:[%s474] sm:$0xf] %vm741, %v834
      %839 = vst.msk [vmem:[%s474 + $0x4] sm:$0xf] %vm741, %v835
      %s840 = smul.u32 %s34, 2
      %s841 = sadd.s32 %s840, %s35
      %s842 = smul.u32 2, %s841
      %p843 = scmp.lt.s32.totalorder %s33, 1
      %s844 = scalar_select %p843, %s33, 1
      %p845 = scmp.lt.s32.totalorder %s842, 7
      %s846 = scalar_select %p845, %s842, 7
      %s847 = smul.addr %s844, 8
      %s848 = sadd.s32 %s846, %s847
      %s849 = smul.addr %s848, 4
      %s850 = scalar_lea.vmem %s8, %s849
      %s851 = smul.u32 %s33, 2
      %s852 = sadd.s32 %s851, %s34
      %p853 = scmp.lt.s32.totalorder %s852, 3
      %s854 = scalar_select %p853, %s852, 3
      %s855 = scalar_lea.vmem %s9, %s854
      %s856 = smul.u32 %s33, 2
      %s857 = sadd.s32 %s856, %s34
      %p858 = scmp.lt.s32.totalorder %s857, 3
      %s859 = scalar_select %p858, %s857, 3
      %s860 = scalar_lea.vmem %s10, %s859
      // Predicated region
      $region53: #{conformer_convolution.2} parent=47 // pred_check
        %p861 = pneg %p240
      $region54: #{conformer_convolution.2} parent=47 // pred_check_branch
        %863 = sbr.rel (%p861) target = $region56
      $region55: #{conformer_convolution.2} parent=47 // pred_region
        %s864 = smul.u32 %s34, 2
        %s865 = sadd.s32 %s864, %s35
        %s866 = smul.u32 2, %s865
      $region56: #{conformer_convolution.2} parent=47 // pred_fallthru
        _
      // Predicated region
      $region57: #{conformer_convolution.2} parent=47 // pred_check
        %p867 = pneg %p270
      $region58: #{conformer_convolution.2} parent=47 // pred_check_branch
        %869 = sbr.rel (%p867) target = $region60
      $region59: #{conformer_convolution.2} parent=47 // pred_region
        %s870 = smul.u32 %s33, 2
        %s871 = sadd.s32 %s870, %s34
      $region60: #{conformer_convolution.2} parent=47 // pred_fallthru
        _
      // Predicated region
      $region61: #{conformer_convolution.2} parent=47 // pred_check
        %p872 = pneg %p300
      $region62: #{conformer_convolution.2} parent=47 // pred_check_branch
        %874 = sbr.rel (%p872) target = $region64
      $region63: #{conformer_convolution.2} parent=47 // pred_region
        %s875 = smul.u32 %s33, 2
        %s876 = sadd.s32 %s875, %s34
      $region64: #{conformer_convolution.2} parent=47 // pred_fallthru
        _
    $region48: #{conformer_convolution.2} parent=5 // pred_fallthru
      _
    %p877 = scmp.le.s32.totalorder 2, %s23
    // Predicated region
    $region65: #{conformer_convolution.2} parent=5 // pred_check
      %p878 = pneg %p877
    $region66: #{conformer_convolution.2} parent=5 // pred_check_branch
      %880 = sbr.rel (%p878) target = $region68
    $region67: #{conformer_convolution.2} parent=5 // pred_region
      %s881 = ssub.s32 %s23, 2
      // Predicated region
      $region69: #{conformer_convolution.2} parent=67 // pred_check
        %p882 = pneg %p246
      $region70: #{conformer_convolution.2} parent=67 // pred_check_branch
        %884 = sbr.rel (%p882) target = $region72
      $region71: #{conformer_convolution.2} parent=67 // pred_region
        %s885 = smul.u32 %s37, 2
        %s886 = sadd.s32 %s885, %s38
        %s887 = smul.u32 2, %s886
        %p888 = scmp.lt.s32.totalorder %s36, 1
        %s889 = scalar_select %p888, %s36, 1
        %p890 = scmp.lt.s32.totalorder %s887, 7
        %s891 = scalar_select %p890, %s887, 7
        %s892 = smul.addr %s889, 8
        %s893 = sadd.s32 %s891, %s892
        %s894 = smul.addr %s893, 4
        %s895 = scalar_lea.vmem %s8, %s894
      $region72: #{conformer_convolution.2} parent=67 // pred_fallthru
        _
      // Predicated region
      $region73: #{conformer_convolution.2} parent=67 // pred_check
        %p896 = pneg %p276
      $region74: #{conformer_convolution.2} parent=67 // pred_check_branch
        %898 = sbr.rel (%p896) target = $region76
      $region75: #{conformer_convolution.2} parent=67 // pred_region
        %s899 = smul.u32 %s36, 2
        %s900 = sadd.s32 %s899, %s37
        %p901 = scmp.lt.s32.totalorder %s900, 3
        %s902 = scalar_select %p901, %s900, 3
        %s903 = scalar_lea.vmem %s9, %s902
      $region76: #{conformer_convolution.2} parent=67 // pred_fallthru
        _
      // Predicated region
      $region77: #{conformer_convolution.2} parent=67 // pred_check
        %p904 = pneg %p306
      $region78: #{conformer_convolution.2} parent=67 // pred_check_branch
        %906 = sbr.rel (%p904) target = $region80
      $region79: #{conformer_convolution.2} parent=67 // pred_region
        %s907 = smul.u32 %s36, 2
        %s908 = sadd.s32 %s907, %s37
        %p909 = scmp.lt.s32.totalorder %s908, 3
        %s910 = scalar_select %p909, %s908, 3
        %s911 = scalar_lea.vmem %s10, %s910
      $region80: #{conformer_convolution.2} parent=67 // pred_fallthru
        _
    $region68: #{conformer_convolution.2} parent=5 // pred_fallthru
      _
  $region6: #{conformer_convolution.2} parent=0 // loop_footer
    %s27 = sadd.s32 1, %s23
  $region7: #{conformer_convolution.2} parent=0 // loop_footer_branch
    %22 = sbr.rel target = $region3
  $region8: #{conformer_convolution.2} parent=0 // loop_exit
    _

</llo_original>
